<compile_context>
chip_gen: v7x
topology: tpu7x:2x2x1
jax: 0.10.0
libtpu: 0.0.40
codegen_flags: <defaults>
</compile_context>

<pallas_src>
import functools

import jax
import jax.numpy as jnp
from jax.experimental import pallas as pl
from jax.experimental.pallas import tpu as pltpu

_LANE = 128
_SUBLANE = 8


def _round_up(n, m):
    return ((n + m - 1) // m) * m


# ----------------------------- Pallas kernel --------------------------------


def _fused_gru_kernel(*refs, num_layers, hidden, hidden_pad, gate_pad,
                      seq_len, packed):
    """All GRU layers + final FC fused into one kernel.

    Ref layout:
      refs[0]                      x_ref    (S, Bp, Fp)   bf16, time-major
      refs[1 + 4*l + 0]            wih_l    (Fin_p, Gp)   bf16
      refs[1 + 4*l + 1]            whh_l    (Hp, Gp)      bf16
      refs[1 + 4*l + 2]            bcomb_l  (1, Gp)       f32  b_ih (+b_hh r,z)
      refs[1 + 4*l + 3]            bhn_l    (1, Gp|Hp)    f32  hidden bias of n
      refs[1 + 4*num_layers + 0]   wfc      (Hp, OUTp)    bf16
      refs[1 + 4*num_layers + 1]   bfc      (1, OUTp)     f32
      refs[1 + 4*num_layers + 2]   out_ref  (Bp, OUTp)    f32
      refs[1 + 4*num_layers + 3]   seq_scr  (S, Bp, Hp)   f32 VMEM scratch

    packed=True  -> gates live in one 128-lane block ordered [ n | z | r | 0 ]
                    (Gp == Hp == 128); r/z are re-aligned with pltpu.roll.
    packed=False -> each gate has its own 128-aligned block, order [r | z | n]
                    (Gp == 3*Hp), PyTorch layout.
    """
    H, Hp, Gp, S = hidden, hidden_pad, gate_pad, seq_len
    x_ref = refs[0]
    wfc_ref = refs[1 + 4 * num_layers]
    bfc_ref = refs[2 + 4 * num_layers]
    out_ref = refs[3 + 4 * num_layers]
    seq_scr = refs[4 + 4 * num_layers]

    Bp = x_ref.shape[1]

    h = None
    for layer in range(num_layers):
        wih = refs[1 + 4 * layer][...]            # bf16 (Fin_p, Gp)
        whh = refs[2 + 4 * layer][...]            # bf16 (Hp, Gp)
        bcomb = refs[3 + 4 * layer][...]          # f32  (1, Gp)
        bhn_ref = refs[4 + 4 * layer]
        # Hoisted broadcast (JAX does not CSE broadcast_in_dim).
        bhn_b = jnp.broadcast_to(bhn_ref[...], (Bp, bhn_ref.shape[1]))

        if layer == 0:
            seq_b = x_ref[...]                    # already bf16
        else:
            seq_b = seq_scr[...].astype(jnp.bfloat16)
        fin = seq_b.shape[2]

        # Hoisted input projection: one big MXU matmul over all timesteps.
        gi_all = jnp.dot(seq_b.reshape(S * Bp, fin), wih,
                         preferred_element_type=jnp.float32) + bcomb
        gi_all = gi_all.reshape(S, Bp, Gp)

        h = jnp.zeros((Bp, Hp), jnp.float32)
        # Fully unrolled recurrence (S is small & static).
        for t in range(S):
            gi = gi_all[t]                                      # (Bp, Gp) f32
            gh = jnp.dot(h.astype(jnp.bfloat16), whh,
                         preferred_element_type=jnp.float32)    # (Bp, Gp) f32
            if packed:
                # Gate block layout: [ n | z | r | pad ], hidden lives at
                # lanes [0, H) of h (== n lanes).
                sg = jax.nn.sigmoid(gi + gh)                    # r, z valid
                r_al = pltpu.roll(sg, shift=Gp - 2 * H, axis=1)  # r -> [0,H)
                n = jnp.tanh(gi + r_al * (gh + bhn_b))           # [0,H) valid
                z_al = pltpu.roll(sg, shift=Gp - H, axis=1)      # z -> [0,H)
                # Padded lanes of h hold bounded garbage (|.| <= 1) that never
                # propagates: all padded weight rows are zero.
                h = n + z_al * (h - n)
            else:
                r = jax.nn.sigmoid(gi[:, 0:Hp] + gh[:, 0:Hp])
                z = jax.nn.sigmoid(gi[:, Hp:2 * Hp] + gh[:, Hp:2 * Hp])
                n = jnp.tanh(gi[:, 2 * Hp:3 * Hp]
                             + r * (gh[:, 2 * Hp:3 * Hp] + bhn_b))
                h = n + z * (h - n)
            if layer < num_layers - 1:
                seq_scr[t] = h                    # bounds live ranges

    # Fused final Linear on the last timestep of the top layer.
    out_ref[...] = (jnp.dot(h.astype(jnp.bfloat16), wfc_ref[...],
                            preferred_element_type=jnp.float32)
                    + bfc_ref[...])


# ------------------------------ Host wrapper --------------------------------


def _vmem_spec():
    return pl.BlockSpec(memory_space=pltpu.MemorySpace.VMEM)


def gru_forward(x, params, *, hidden_dim, num_layers):
    """Forward pass equivalent to GRU.forward(x) in the PyTorch module."""
    x = x.astype(jnp.float32)
    B, S, F = x.shape
    H = hidden_dim

    Bp = _round_up(max(B, _SUBLANE), _SUBLANE)
    Hp = _round_up(H, _LANE)
    Fp = _round_up(F, _LANE)
    packed = (3 * H <= _LANE)           # all 3 gates fit one 128-lane block
    Gp = _LANE if packed else 3 * Hp

    w_fc_t, b_fc = params["fc"]
    out_dim = w_fc_t.shape[1]
    OUTp = _round_up(out_dim, _LANE)

    # Time-major, zero-padded, bf16 (MXU operand dtype).
    xs = jnp.transpose(x, (1, 0, 2))                           # (S, B, F)
    xs = jnp.pad(xs, ((0, 0), (0, Bp - B), (0, Fp - F)))       # (S, Bp, Fp)
    xs = xs.astype(jnp.bfloat16)

    def place_gates(w, rows_p):
        # w: (rows, 3H) in PyTorch gate order [r | z | n] -> (rows_p, Gp).
        rows = w.shape[0]
        out = jnp.zeros((rows_p, Gp), w.dtype)
        if packed:
            # Packed order [ n | z | r ] so the n gate is lane-aligned with h.
            out = out.at[:rows, 0:H].set(w[:, 2 * H:3 * H])
            out = out.at[:rows, H:2 * H].set(w[:, H:2 * H])
            out = out.at[:rows, 2 * H:3 * H].set(w[:, 0:H])
        else:
            for g in range(3):
                out = out.at[:rows, g * Hp:g * Hp + H].set(w[:, g * H:(g + 1) * H])
        return out

    kernel_inputs = [xs]
    for layer in range(num_layers):
        wih_t, whh_t, bih, bhh = params[f"layer{layer}"]
        fin_p = Fp if layer == 0 else Hp

        wih_p = place_gates(wih_t, fin_p).astype(jnp.bfloat16)   # (Fin_p, Gp)
        whh_p = place_gates(whh_t, Hp).astype(jnp.bfloat16)      # (Hp, Gp)

        # Pre-fold biases: r/z gates get b_ih + b_hh; the n gate keeps only
        # b_in here (its hidden bias b_hn must stay inside, scaled by r).
        b_comb = jnp.concatenate([
            bih[:, 0:H] + bhh[:, 0:H],
            bih[:, H:2 * H] + bhh[:, H:2 * H],
            bih[:, 2 * H:3 * H],
        ], axis=1)
        b_comb_p = place_gates(b_comb, 1)                        # (1, Gp) f32

        bhn_w = Gp if packed else Hp
        b_hn_p = jnp.zeros((1, bhn_w), jnp.float32)
        b_hn_p = b_hn_p.at[:, 0:H].set(bhh[:, 2 * H:3 * H])

        kernel_inputs += [wih_p, whh_p, b_comb_p, b_hn_p]

    wfc_p = jnp.pad(w_fc_t, ((0, Hp - H), (0, OUTp - out_dim))).astype(jnp.bfloat16)
    bfc_p = jnp.pad(b_fc, ((0, 0), (0, OUTp - out_dim)))
    kernel_inputs += [wfc_p, bfc_p]

    kernel = functools.partial(
        _fused_gru_kernel, num_layers=num_layers, hidden=H, hidden_pad=Hp,
        gate_pad=Gp, seq_len=S, packed=packed)

    # VMEM limit sized from the actual padded buffers (+ gi_all temporaries),
    # with 2x headroom.
    vmem_bytes = sum(int(a.size) * a.dtype.itemsize for a in kernel_inputs)
    vmem_bytes += Bp * OUTp * 4                 # output
    vmem_bytes += S * Bp * Hp * 4               # inter-layer scratch
    vmem_bytes += 2 * S * Bp * Gp * 4           # gi_all + temporaries
    vmem_limit = int(min(112 * 2 ** 20, max(32 * 2 ** 20, 2 * vmem_bytes)))

    out_p = pl.pallas_call(
        kernel,
        out_shape=jax.ShapeDtypeStruct((Bp, OUTp), jnp.float32),
        in_specs=[_vmem_spec()] * len(kernel_inputs),
        out_specs=_vmem_spec(),
        scratch_shapes=[pltpu.VMEM((S, Bp, Hp), jnp.float32)],
        compiler_params=pltpu.CompilerParams(vmem_limit_bytes=vmem_limit),
    )(*kernel_inputs)

    return out_p[:B, :out_dim]


# ------------------------- deterministic parameters -------------------------


def init_params(key, input_dim, hidden_dim, num_layers, output_dim):
    """PyTorch-style uniform(-1/sqrt(H), 1/sqrt(H)) init, deterministic."""
    params = {}
    k_gru = 1.0 / jnp.sqrt(jnp.float32(hidden_dim))
    for layer in range(num_layers):
        fin = input_dim if layer == 0 else hidden_dim
        key, k1, k2, k3, k4 = jax.random.split(key, 5)
        w_ih = jax.random.uniform(k1, (3 * hidden_dim, fin),
                                  minval=-k_gru, maxval=k_gru, dtype=jnp.float32)
        w_hh = jax.random.uniform(k2, (3 * hidden_dim, hidden_dim),
                                  minval=-k_gru, maxval=k_gru, dtype=jnp.float32)
        b_ih = jax.random.uniform(k3, (3 * hidden_dim,),
                                  minval=-k_gru, maxval=k_gru, dtype=jnp.float32)
        b_hh = jax.random.uniform(k4, (3 * hidden_dim,),
                                  minval=-k_gru, maxval=k_gru, dtype=jnp.float32)
        # transposed weights / 2D biases (lane-friendly layout)
        params[f"layer{layer}"] = (w_ih.T, w_hh.T,
                                   b_ih.reshape(1, -1), b_hh.reshape(1, -1))
    k_fc = 1.0 / jnp.sqrt(jnp.float32(hidden_dim))
    key, k1, k2 = jax.random.split(key, 3)
    w_fc = jax.random.uniform(k1, (output_dim, hidden_dim),
                              minval=-k_fc, maxval=k_fc, dtype=jnp.float32)
    b_fc = jax.random.uniform(k2, (output_dim,),
                              minval=-k_fc, maxval=k_fc, dtype=jnp.float32)
    params["fc"] = (w_fc.T, b_fc.reshape(1, -1))
    return params


# --------------------------- pure-JAX reference -----------------------------


def gru_forward_ref(x, params, *, hidden_dim, num_layers):
    x = x.astype(jnp.float32)
    B, S, _ = x.shape
    H = hidden_dim
    seq = x
    for layer in range(num_layers):
        wih_t, whh_t, bih, bhh = params[f"layer{layer}"]
        h = jnp.zeros((B, H), jnp.float32)
        outs = []
        for t in range(S):
            gi = seq[:, t, :] @ wih_t + bih
            gh = h @ whh_t + bhh
            i_r, i_z, i_n = gi[:, :H], gi[:, H:2 * H], gi[:, 2 * H:]
            h_r, h_z, h_n = gh[:, :H], gh[:, H:2 * H], gh[:, 2 * H:]
            r = jax.nn.sigmoid(i_r + h_r)
            z = jax.nn.sigmoid(i_z + h_z)
            n = jnp.tanh(i_n + r * h_n)
            h = (1.0 - z) * n + z * h
            outs.append(h)
        seq = jnp.stack(outs, axis=1)
    w_fc_t, b_fc = params["fc"]
    return seq[:, -1, :] @ w_fc_t + b_fc


# ---------------------------------- main ------------------------------------


if __name__ == "__main__":
    input_dim, hidden_dim, num_layers, output_dim = 4, 32, 2, 1
    batch, seq = 2, 8

    key = jax.random.PRNGKey(0)
    key, kx = jax.random.split(key)
    x = jax.random.normal(kx, (batch, seq, input_dim), dtype=jnp.float32)

    params = init_params(key, input_dim, hidden_dim, num_layers, output_dim)

    out = gru_forward(x, params, hidden_dim=hidden_dim, num_layers=num_layers)
    out = jax.block_until_ready(out)

    ref = gru_forward_ref(x, params, hidden_dim=hidden_dim, num_layers=num_layers)
    assert out.shape == (batch, output_dim), out.shape
    # Kernel uses bf16 MXU operands (f32 accumulation); reference is pure f32,
    # so the tolerance is loosened accordingly.
    assert jnp.allclose(out, ref, atol=2e-2, rtol=2e-2), (out, ref)

    print("KERNEL_OK")
</pallas_src>

<mosaic_0001>
module attributes {stable_mosaic.version = 11 : i64} {
  func.func @_fused_gru_kernel(%arg0: memref<8x8x128xbf16, #tpu.memory_space<vmem>>, %arg1: memref<128x128xbf16, #tpu.memory_space<vmem>>, %arg2: memref<128x128xbf16, #tpu.memory_space<vmem>>, %arg3: memref<1x128xf32, #tpu.memory_space<vmem>>, %arg4: memref<1x128xf32, #tpu.memory_space<vmem>>, %arg5: memref<128x128xbf16, #tpu.memory_space<vmem>>, %arg6: memref<128x128xbf16, #tpu.memory_space<vmem>>, %arg7: memref<1x128xf32, #tpu.memory_space<vmem>>, %arg8: memref<1x128xf32, #tpu.memory_space<vmem>>, %arg9: memref<128x128xbf16, #tpu.memory_space<vmem>>, %arg10: memref<1x128xf32, #tpu.memory_space<vmem>>, %arg11: memref<8x128xf32, #tpu.memory_space<vmem>>, %arg12: memref<8x8x128xf32, #tpu.memory_space<vmem>>) attributes {dimension_semantics = [], scalar_prefetch = 0 : i64, scratch_operands = 1 : i64, tpu.core_type = #tpu.core_type<tc>} {
    %c0 = arith.constant 0 : index
    %c0_0 = arith.constant 0 : index
    %0 = vector.load %arg1[%c0, %c0_0] : memref<128x128xbf16, #tpu.memory_space<vmem>>, vector<128x128xbf16>
    %c0_1 = arith.constant 0 : index
    %c0_2 = arith.constant 0 : index
    %1 = vector.load %arg2[%c0_1, %c0_2] : memref<128x128xbf16, #tpu.memory_space<vmem>>, vector<128x128xbf16>
    %c0_3 = arith.constant 0 : index
    %c0_4 = arith.constant 0 : index
    %2 = vector.load %arg3[%c0_3, %c0_4] : memref<1x128xf32, #tpu.memory_space<vmem>>, vector<1x128xf32>
    %c0_5 = arith.constant 0 : index
    %c0_6 = arith.constant 0 : index
    %3 = vector.load %arg4[%c0_5, %c0_6] : memref<1x128xf32, #tpu.memory_space<vmem>>, vector<1x128xf32>
    %4 = vector.shape_cast %3 : vector<1x128xf32> to vector<1x128xf32>
    %5 = vector.broadcast %4 : vector<1x128xf32> to vector<8x128xf32>
    %c0_7 = arith.constant 0 : index
    %c0_8 = arith.constant 0 : index
    %c0_9 = arith.constant 0 : index
    %6 = vector.load %arg0[%c0_7, %c0_8, %c0_9] : memref<8x8x128xbf16, #tpu.memory_space<vmem>>, vector<8x8x128xbf16>
    %7 = vector.shape_cast %6 : vector<8x8x128xbf16> to vector<64x128xbf16>
    %cst = arith.constant dense<0.000000e+00> : vector<64x128xf32>
    %8 = tpu.matmul %7, %0, %cst {dimension_numbers = #tpu.dot_dimension_numbers<[1], [0], [0], [1], [0, 0, 1, 1], [], []>} : vector<64x128xbf16>, vector<128x128xbf16>, vector<64x128xf32> -> vector<64x128xf32>
    %9 = vector.broadcast %2 : vector<1x128xf32> to vector<64x128xf32>
    %10 = arith.addf %8, %9 : vector<64x128xf32>
    %11 = vector.shape_cast %10 : vector<64x128xf32> to vector<8x8x128xf32>
    %cst_10 = arith.constant 0.000000e+00 : f32
    %12 = vector.broadcast %cst_10 : f32 to vector<8x128xf32>
    %13 = vector.extract_strided_slice %11 {offsets = [0, 0, 0], sizes = [1, 8, 128], strides = [1, 1, 1]} : vector<8x8x128xf32> to vector<1x8x128xf32>
    %14 = vector.shape_cast %13 : vector<1x8x128xf32> to vector<8x128xf32>
    %15 = arith.truncf %12 : vector<8x128xf32> to vector<8x128xbf16>
    %cst_11 = arith.constant dense<0.000000e+00> : vector<8x128xf32>
    %16 = tpu.matmul %15, %1, %cst_11 {dimension_numbers = #tpu.dot_dimension_numbers<[1], [0], [0], [1], [0, 0, 1, 1], [], []>} : vector<8x128xbf16>, vector<128x128xbf16>, vector<8x128xf32> -> vector<8x128xf32>
    %17 = arith.addf %14, %16 : vector<8x128xf32>
    %18 = arith.negf %17 : vector<8x128xf32>
    %19 = math.exp %18 : vector<8x128xf32>
    %cst_12 = arith.constant 1.000000e+00 : f32
    %20 = vector.broadcast %cst_12 : f32 to vector<8x128xf32>
    %21 = arith.addf %20, %19 : vector<8x128xf32>
    %22 = arith.divf %20, %21 : vector<8x128xf32>
    %c64_i32 = arith.constant 64 : i32
    %23 = tpu.dynamic_rotate %22 by %c64_i32 dim 1 : vector<8x128xf32>, i32 -> vector<8x128xf32>
    %24 = arith.addf %16, %5 : vector<8x128xf32>
    %25 = arith.mulf %23, %24 : vector<8x128xf32>
    %26 = arith.addf %14, %25 : vector<8x128xf32>
    %27 = math.tanh %26 : vector<8x128xf32>
    %c96_i32 = arith.constant 96 : i32
    %28 = tpu.dynamic_rotate %22 by %c96_i32 dim 1 : vector<8x128xf32>, i32 -> vector<8x128xf32>
    %29 = arith.subf %12, %27 : vector<8x128xf32>
    %30 = arith.mulf %28, %29 : vector<8x128xf32>
    %31 = arith.addf %27, %30 : vector<8x128xf32>
    %c0_13 = arith.constant 0 : index
    %c0_14 = arith.constant 0 : index
    %c0_15 = arith.constant 0 : index
    %32 = vector.load %arg12[%c0_13, %c0_14, %c0_15] : memref<8x8x128xf32, #tpu.memory_space<vmem>>, vector<1x8x128xf32>
    %33 = vector.shape_cast %32 : vector<1x8x128xf32> to vector<8x128xf32>
    %34 = vector.shape_cast %31 : vector<8x128xf32> to vector<1x8x128xf32>
    tpu.vector_store %arg12[%c0_13, %c0_14, %c0_15], %34 {strides = array<i32>} : memref<8x8x128xf32, #tpu.memory_space<vmem>>, vector<1x8x128xf32>,
    %35 = vector.extract_strided_slice %11 {offsets = [1, 0, 0], sizes = [1, 8, 128], strides = [1, 1, 1]} : vector<8x8x128xf32> to vector<1x8x128xf32>
    %36 = vector.shape_cast %35 : vector<1x8x128xf32> to vector<8x128xf32>
    %37 = arith.truncf %31 : vector<8x128xf32> to vector<8x128xbf16>
    %cst_16 = arith.constant dense<0.000000e+00> : vector<8x128xf32>
    %38 = tpu.matmul %37, %1, %cst_16 {dimension_numbers = #tpu.dot_dimension_numbers<[1], [0], [0], [1], [0, 0, 1, 1], [], []>} : vector<8x128xbf16>, vector<128x128xbf16>, vector<8x128xf32> -> vector<8x128xf32>
    %39 = arith.addf %36, %38 : vector<8x128xf32>
    %40 = arith.negf %39 : vector<8x128xf32>
    %41 = math.exp %40 : vector<8x128xf32>
    %cst_17 = arith.constant 1.000000e+00 : f32
    %42 = vector.broadcast %cst_17 : f32 to vector<8x128xf32>
    %43 = arith.addf %42, %41 : vector<8x128xf32>
    %44 = arith.divf %42, %43 : vector<8x128xf32>
    %c64_i32_18 = arith.constant 64 : i32
    %45 = tpu.dynamic_rotate %44 by %c64_i32_18 dim 1 : vector<8x128xf32>, i32 -> vector<8x128xf32>
    %46 = arith.addf %38, %5 : vector<8x128xf32>
    %47 = arith.mulf %45, %46 : vector<8x128xf32>
    %48 = arith.addf %36, %47 : vector<8x128xf32>
    %49 = math.tanh %48 : vector<8x128xf32>
    %c96_i32_19 = arith.constant 96 : i32
    %50 = tpu.dynamic_rotate %44 by %c96_i32_19 dim 1 : vector<8x128xf32>, i32 -> vector<8x128xf32>
    %51 = arith.subf %31, %49 : vector<8x128xf32>
    %52 = arith.mulf %50, %51 : vector<8x128xf32>
    %53 = arith.addf %49, %52 : vector<8x128xf32>
    %c1 = arith.constant 1 : index
    %c0_20 = arith.constant 0 : index
    %c0_21 = arith.constant 0 : index
    %54 = vector.load %arg12[%c1, %c0_20, %c0_21] : memref<8x8x128xf32, #tpu.memory_space<vmem>>, vector<1x8x128xf32>
    %55 = vector.shape_cast %54 : vector<1x8x128xf32> to vector<8x128xf32>
    %56 = vector.shape_cast %53 : vector<8x128xf32> to vector<1x8x128xf32>
    tpu.vector_store %arg12[%c1, %c0_20, %c0_21], %56 {strides = array<i32>} : memref<8x8x128xf32, #tpu.memory_space<vmem>>, vector<1x8x128xf32>,
    %57 = vector.extract_strided_slice %11 {offsets = [2, 0, 0], sizes = [1, 8, 128], strides = [1, 1, 1]} : vector<8x8x128xf32> to vector<1x8x128xf32>
    %58 = vector.shape_cast %57 : vector<1x8x128xf32> to vector<8x128xf32>
    %59 = arith.truncf %53 : vector<8x128xf32> to vector<8x128xbf16>
    %cst_22 = arith.constant dense<0.000000e+00> : vector<8x128xf32>
    %60 = tpu.matmul %59, %1, %cst_22 {dimension_numbers = #tpu.dot_dimension_numbers<[1], [0], [0], [1], [0, 0, 1, 1], [], []>} : vector<8x128xbf16>, vector<128x128xbf16>, vector<8x128xf32> -> vector<8x128xf32>
    %61 = arith.addf %58, %60 : vector<8x128xf32>
    %62 = arith.negf %61 : vector<8x128xf32>
    %63 = math.exp %62 : vector<8x128xf32>
    %cst_23 = arith.constant 1.000000e+00 : f32
    %64 = vector.broadcast %cst_23 : f32 to vector<8x128xf32>
    %65 = arith.addf %64, %63 : vector<8x128xf32>
    %66 = arith.divf %64, %65 : vector<8x128xf32>
    %c64_i32_24 = arith.constant 64 : i32
    %67 = tpu.dynamic_rotate %66 by %c64_i32_24 dim 1 : vector<8x128xf32>, i32 -> vector<8x128xf32>
    %68 = arith.addf %60, %5 : vector<8x128xf32>
    %69 = arith.mulf %67, %68 : vector<8x128xf32>
    %70 = arith.addf %58, %69 : vector<8x128xf32>
    %71 = math.tanh %70 : vector<8x128xf32>
    %c96_i32_25 = arith.constant 96 : i32
    %72 = tpu.dynamic_rotate %66 by %c96_i32_25 dim 1 : vector<8x128xf32>, i32 -> vector<8x128xf32>
    %73 = arith.subf %53, %71 : vector<8x128xf32>
    %74 = arith.mulf %72, %73 : vector<8x128xf32>
    %75 = arith.addf %71, %74 : vector<8x128xf32>
    %c2 = arith.constant 2 : index
    %c0_26 = arith.constant 0 : index
    %c0_27 = arith.constant 0 : index
    %76 = vector.load %arg12[%c2, %c0_26, %c0_27] : memref<8x8x128xf32, #tpu.memory_space<vmem>>, vector<1x8x128xf32>
    %77 = vector.shape_cast %76 : vector<1x8x128xf32> to vector<8x128xf32>
    %78 = vector.shape_cast %75 : vector<8x128xf32> to vector<1x8x128xf32>
    tpu.vector_store %arg12[%c2, %c0_26, %c0_27], %78 {strides = array<i32>} : memref<8x8x128xf32, #tpu.memory_space<vmem>>, vector<1x8x128xf32>,
    %79 = vector.extract_strided_slice %11 {offsets = [3, 0, 0], sizes = [1, 8, 128], strides = [1, 1, 1]} : vector<8x8x128xf32> to vector<1x8x128xf32>
    %80 = vector.shape_cast %79 : vector<1x8x128xf32> to vector<8x128xf32>
    %81 = arith.truncf %75 : vector<8x128xf32> to vector<8x128xbf16>
    %cst_28 = arith.constant dense<0.000000e+00> : vector<8x128xf32>
    %82 = tpu.matmul %81, %1, %cst_28 {dimension_numbers = #tpu.dot_dimension_numbers<[1], [0], [0], [1], [0, 0, 1, 1], [], []>} : vector<8x128xbf16>, vector<128x128xbf16>, vector<8x128xf32> -> vector<8x128xf32>
    %83 = arith.addf %80, %82 : vector<8x128xf32>
    %84 = arith.negf %83 : vector<8x128xf32>
    %85 = math.exp %84 : vector<8x128xf32>
    %cst_29 = arith.constant 1.000000e+00 : f32
    %86 = vector.broadcast %cst_29 : f32 to vector<8x128xf32>
    %87 = arith.addf %86, %85 : vector<8x128xf32>
    %88 = arith.divf %86, %87 : vector<8x128xf32>
    %c64_i32_30 = arith.constant 64 : i32
    %89 = tpu.dynamic_rotate %88 by %c64_i32_30 dim 1 : vector<8x128xf32>, i32 -> vector<8x128xf32>
    %90 = arith.addf %82, %5 : vector<8x128xf32>
    %91 = arith.mulf %89, %90 : vector<8x128xf32>
    %92 = arith.addf %80, %91 : vector<8x128xf32>
    %93 = math.tanh %92 : vector<8x128xf32>
    %c96_i32_31 = arith.constant 96 : i32
    %94 = tpu.dynamic_rotate %88 by %c96_i32_31 dim 1 : vector<8x128xf32>, i32 -> vector<8x128xf32>
    %95 = arith.subf %75, %93 : vector<8x128xf32>
    %96 = arith.mulf %94, %95 : vector<8x128xf32>
    %97 = arith.addf %93, %96 : vector<8x128xf32>
    %c3 = arith.constant 3 : index
    %c0_32 = arith.constant 0 : index
    %c0_33 = arith.constant 0 : index
    %98 = vector.load %arg12[%c3, %c0_32, %c0_33] : memref<8x8x128xf32, #tpu.memory_space<vmem>>, vector<1x8x128xf32>
    %99 = vector.shape_cast %98 : vector<1x8x128xf32> to vector<8x128xf32>
    %100 = vector.shape_cast %97 : vector<8x128xf32> to vector<1x8x128xf32>
    tpu.vector_store %arg12[%c3, %c0_32, %c0_33], %100 {strides = array<i32>} : memref<8x8x128xf32, #tpu.memory_space<vmem>>, vector<1x8x128xf32>,
    %101 = vector.extract_strided_slice %11 {offsets = [4, 0, 0], sizes = [1, 8, 128], strides = [1, 1, 1]} : vector<8x8x128xf32> to vector<1x8x128xf32>
    %102 = vector.shape_cast %101 : vector<1x8x128xf32> to vector<8x128xf32>
    %103 = arith.truncf %97 : vector<8x128xf32> to vector<8x128xbf16>
    %cst_34 = arith.constant dense<0.000000e+00> : vector<8x128xf32>
    %104 = tpu.matmul %103, %1, %cst_34 {dimension_numbers = #tpu.dot_dimension_numbers<[1], [0], [0], [1], [0, 0, 1, 1], [], []>} : vector<8x128xbf16>, vector<128x128xbf16>, vector<8x128xf32> -> vector<8x128xf32>
    %105 = arith.addf %102, %104 : vector<8x128xf32>
    %106 = arith.negf %105 : vector<8x128xf32>
    %107 = math.exp %106 : vector<8x128xf32>
    %cst_35 = arith.constant 1.000000e+00 : f32
    %108 = vector.broadcast %cst_35 : f32 to vector<8x128xf32>
    %109 = arith.addf %108, %107 : vector<8x128xf32>
    %110 = arith.divf %108, %109 : vector<8x128xf32>
    %c64_i32_36 = arith.constant 64 : i32
    %111 = tpu.dynamic_rotate %110 by %c64_i32_36 dim 1 : vector<8x128xf32>, i32 -> vector<8x128xf32>
    %112 = arith.addf %104, %5 : vector<8x128xf32>
    %113 = arith.mulf %111, %112 : vector<8x128xf32>
    %114 = arith.addf %102, %113 : vector<8x128xf32>
    %115 = math.tanh %114 : vector<8x128xf32>
    %c96_i32_37 = arith.constant 96 : i32
    %116 = tpu.dynamic_rotate %110 by %c96_i32_37 dim 1 : vector<8x128xf32>, i32 -> vector<8x128xf32>
    %117 = arith.subf %97, %115 : vector<8x128xf32>
    %118 = arith.mulf %116, %117 : vector<8x128xf32>
    %119 = arith.addf %115, %118 : vector<8x128xf32>
    %c4 = arith.constant 4 : index
    %c0_38 = arith.constant 0 : index
    %c0_39 = arith.constant 0 : index
    %120 = vector.load %arg12[%c4, %c0_38, %c0_39] : memref<8x8x128xf32, #tpu.memory_space<vmem>>, vector<1x8x128xf32>
    %121 = vector.shape_cast %120 : vector<1x8x128xf32> to vector<8x128xf32>
    %122 = vector.shape_cast %119 : vector<8x128xf32> to vector<1x8x128xf32>
    tpu.vector_store %arg12[%c4, %c0_38, %c0_39], %122 {strides = array<i32>} : memref<8x8x128xf32, #tpu.memory_space<vmem>>, vector<1x8x128xf32>,
    %123 = vector.extract_strided_slice %11 {offsets = [5, 0, 0], sizes = [1, 8, 128], strides = [1, 1, 1]} : vector<8x8x128xf32> to vector<1x8x128xf32>
    %124 = vector.shape_cast %123 : vector<1x8x128xf32> to vector<8x128xf32>
    %125 = arith.truncf %119 : vector<8x128xf32> to vector<8x128xbf16>
    %cst_40 = arith.constant dense<0.000000e+00> : vector<8x128xf32>
    %126 = tpu.matmul %125, %1, %cst_40 {dimension_numbers = #tpu.dot_dimension_numbers<[1], [0], [0], [1], [0, 0, 1, 1], [], []>} : vector<8x128xbf16>, vector<128x128xbf16>, vector<8x128xf32> -> vector<8x128xf32>
    %127 = arith.addf %124, %126 : vector<8x128xf32>
    %128 = arith.negf %127 : vector<8x128xf32>
    %129 = math.exp %128 : vector<8x128xf32>
    %cst_41 = arith.constant 1.000000e+00 : f32
    %130 = vector.broadcast %cst_41 : f32 to vector<8x128xf32>
    %131 = arith.addf %130, %129 : vector<8x128xf32>
    %132 = arith.divf %130, %131 : vector<8x128xf32>
    %c64_i32_42 = arith.constant 64 : i32
    %133 = tpu.dynamic_rotate %132 by %c64_i32_42 dim 1 : vector<8x128xf32>, i32 -> vector<8x128xf32>
    %134 = arith.addf %126, %5 : vector<8x128xf32>
    %135 = arith.mulf %133, %134 : vector<8x128xf32>
    %136 = arith.addf %124, %135 : vector<8x128xf32>
    %137 = math.tanh %136 : vector<8x128xf32>
    %c96_i32_43 = arith.constant 96 : i32
    %138 = tpu.dynamic_rotate %132 by %c96_i32_43 dim 1 : vector<8x128xf32>, i32 -> vector<8x128xf32>
    %139 = arith.subf %119, %137 : vector<8x128xf32>
    %140 = arith.mulf %138, %139 : vector<8x128xf32>
    %141 = arith.addf %137, %140 : vector<8x128xf32>
    %c5 = arith.constant 5 : index
    %c0_44 = arith.constant 0 : index
    %c0_45 = arith.constant 0 : index
    %142 = vector.load %arg12[%c5, %c0_44, %c0_45] : memref<8x8x128xf32, #tpu.memory_space<vmem>>, vector<1x8x128xf32>
    %143 = vector.shape_cast %142 : vector<1x8x128xf32> to vector<8x128xf32>
    %144 = vector.shape_cast %141 : vector<8x128xf32> to vector<1x8x128xf32>
    tpu.vector_store %arg12[%c5, %c0_44, %c0_45], %144 {strides = array<i32>} : memref<8x8x128xf32, #tpu.memory_space<vmem>>, vector<1x8x128xf32>,
    %145 = vector.extract_strided_slice %11 {offsets = [6, 0, 0], sizes = [1, 8, 128], strides = [1, 1, 1]} : vector<8x8x128xf32> to vector<1x8x128xf32>
    %146 = vector.shape_cast %145 : vector<1x8x128xf32> to vector<8x128xf32>
    %147 = arith.truncf %141 : vector<8x128xf32> to vector<8x128xbf16>
    %cst_46 = arith.constant dense<0.000000e+00> : vector<8x128xf32>
    %148 = tpu.matmul %147, %1, %cst_46 {dimension_numbers = #tpu.dot_dimension_numbers<[1], [0], [0], [1], [0, 0, 1, 1], [], []>} : vector<8x128xbf16>, vector<128x128xbf16>, vector<8x128xf32> -> vector<8x128xf32>
    %149 = arith.addf %146, %148 : vector<8x128xf32>
    %150 = arith.negf %149 : vector<8x128xf32>
    %151 = math.exp %150 : vector<8x128xf32>
    %cst_47 = arith.constant 1.000000e+00 : f32
    %152 = vector.broadcast %cst_47 : f32 to vector<8x128xf32>
    %153 = arith.addf %152, %151 : vector<8x128xf32>
    %154 = arith.divf %152, %153 : vector<8x128xf32>
    %c64_i32_48 = arith.constant 64 : i32
    %155 = tpu.dynamic_rotate %154 by %c64_i32_48 dim 1 : vector<8x128xf32>, i32 -> vector<8x128xf32>
    %156 = arith.addf %148, %5 : vector<8x128xf32>
    %157 = arith.mulf %155, %156 : vector<8x128xf32>
    %158 = arith.addf %146, %157 : vector<8x128xf32>
    %159 = math.tanh %158 : vector<8x128xf32>
    %c96_i32_49 = arith.constant 96 : i32
    %160 = tpu.dynamic_rotate %154 by %c96_i32_49 dim 1 : vector<8x128xf32>, i32 -> vector<8x128xf32>
    %161 = arith.subf %141, %159 : vector<8x128xf32>
    %162 = arith.mulf %160, %161 : vector<8x128xf32>
    %163 = arith.addf %159, %162 : vector<8x128xf32>
    %c6 = arith.constant 6 : index
    %c0_50 = arith.constant 0 : index
    %c0_51 = arith.constant 0 : index
    %164 = vector.load %arg12[%c6, %c0_50, %c0_51] : memref<8x8x128xf32, #tpu.memory_space<vmem>>, vector<1x8x128xf32>
    %165 = vector.shape_cast %164 : vector<1x8x128xf32> to vector<8x128xf32>
    %166 = vector.shape_cast %163 : vector<8x128xf32> to vector<1x8x128xf32>
    tpu.vector_store %arg12[%c6, %c0_50, %c0_51], %166 {strides = array<i32>} : memref<8x8x128xf32, #tpu.memory_space<vmem>>, vector<1x8x128xf32>,
    %167 = vector.extract_strided_slice %11 {offsets = [7, 0, 0], sizes = [1, 8, 128], strides = [1, 1, 1]} : vector<8x8x128xf32> to vector<1x8x128xf32>
    %168 = vector.shape_cast %167 : vector<1x8x128xf32> to vector<8x128xf32>
    %169 = arith.truncf %163 : vector<8x128xf32> to vector<8x128xbf16>
    %cst_52 = arith.constant dense<0.000000e+00> : vector<8x128xf32>
    %170 = tpu.matmul %169, %1, %cst_52 {dimension_numbers = #tpu.dot_dimension_numbers<[1], [0], [0], [1], [0, 0, 1, 1], [], []>} : vector<8x128xbf16>, vector<128x128xbf16>, vector<8x128xf32> -> vector<8x128xf32>
    %171 = arith.addf %168, %170 : vector<8x128xf32>
    %172 = arith.negf %171 : vector<8x128xf32>
    %173 = math.exp %172 : vector<8x128xf32>
    %cst_53 = arith.constant 1.000000e+00 : f32
    %174 = vector.broadcast %cst_53 : f32 to vector<8x128xf32>
    %175 = arith.addf %174, %173 : vector<8x128xf32>
    %176 = arith.divf %174, %175 : vector<8x128xf32>
    %c64_i32_54 = arith.constant 64 : i32
    %177 = tpu.dynamic_rotate %176 by %c64_i32_54 dim 1 : vector<8x128xf32>, i32 -> vector<8x128xf32>
    %178 = arith.addf %170, %5 : vector<8x128xf32>
    %179 = arith.mulf %177, %178 : vector<8x128xf32>
    %180 = arith.addf %168, %179 : vector<8x128xf32>
    %181 = math.tanh %180 : vector<8x128xf32>
    %c96_i32_55 = arith.constant 96 : i32
    %182 = tpu.dynamic_rotate %176 by %c96_i32_55 dim 1 : vector<8x128xf32>, i32 -> vector<8x128xf32>
    %183 = arith.subf %163, %181 : vector<8x128xf32>
    %184 = arith.mulf %182, %183 : vector<8x128xf32>
    %185 = arith.addf %181, %184 : vector<8x128xf32>
    %c7 = arith.constant 7 : index
    %c0_56 = arith.constant 0 : index
    %c0_57 = arith.constant 0 : index
    %186 = vector.load %arg12[%c7, %c0_56, %c0_57] : memref<8x8x128xf32, #tpu.memory_space<vmem>>, vector<1x8x128xf32>
    %187 = vector.shape_cast %186 : vector<1x8x128xf32> to vector<8x128xf32>
    %188 = vector.shape_cast %185 : vector<8x128xf32> to vector<1x8x128xf32>
    tpu.vector_store %arg12[%c7, %c0_56, %c0_57], %188 {strides = array<i32>} : memref<8x8x128xf32, #tpu.memory_space<vmem>>, vector<1x8x128xf32>,
    %c0_58 = arith.constant 0 : index
    %c0_59 = arith.constant 0 : index
    %189 = vector.load %arg5[%c0_58, %c0_59] : memref<128x128xbf16, #tpu.memory_space<vmem>>, vector<128x128xbf16>
    %c0_60 = arith.constant 0 : index
    %c0_61 = arith.constant 0 : index
    %190 = vector.load %arg6[%c0_60, %c0_61] : memref<128x128xbf16, #tpu.memory_space<vmem>>, vector<128x128xbf16>
    %c0_62 = arith.constant 0 : index
    %c0_63 = arith.constant 0 : index
    %191 = vector.load %arg7[%c0_62, %c0_63] : memref<1x128xf32, #tpu.memory_space<vmem>>, vector<1x128xf32>
    %c0_64 = arith.constant 0 : index
    %c0_65 = arith.constant 0 : index
    %192 = vector.load %arg8[%c0_64, %c0_65] : memref<1x128xf32, #tpu.memory_space<vmem>>, vector<1x128xf32>
    %193 = vector.shape_cast %192 : vector<1x128xf32> to vector<1x128xf32>
    %194 = vector.broadcast %193 : vector<1x128xf32> to vector<8x128xf32>
    %c0_66 = arith.constant 0 : index
    %c0_67 = arith.constant 0 : index
    %c0_68 = arith.constant 0 : index
    %195 = vector.load %arg12[%c0_66, %c0_67, %c0_68] : memref<8x8x128xf32, #tpu.memory_space<vmem>>, vector<8x8x128xf32>
    %196 = arith.truncf %195 : vector<8x8x128xf32> to vector<8x8x128xbf16>
    %197 = vector.shape_cast %196 : vector<8x8x128xbf16> to vector<64x128xbf16>
    %cst_69 = arith.constant dense<0.000000e+00> : vector<64x128xf32>
    %198 = tpu.matmul %197, %189, %cst_69 {dimension_numbers = #tpu.dot_dimension_numbers<[1], [0], [0], [1], [0, 0, 1, 1], [], []>} : vector<64x128xbf16>, vector<128x128xbf16>, vector<64x128xf32> -> vector<64x128xf32>
    %199 = vector.broadcast %191 : vector<1x128xf32> to vector<64x128xf32>
    %200 = arith.addf %198, %199 : vector<64x128xf32>
    %201 = vector.shape_cast %200 : vector<64x128xf32> to vector<8x8x128xf32>
    %cst_70 = arith.constant 0.000000e+00 : f32
    %202 = vector.broadcast %cst_70 : f32 to vector<8x128xf32>
    %203 = vector.extract_strided_slice %201 {offsets = [0, 0, 0], sizes = [1, 8, 128], strides = [1, 1, 1]} : vector<8x8x128xf32> to vector<1x8x128xf32>
    %204 = vector.shape_cast %203 : vector<1x8x128xf32> to vector<8x128xf32>
    %205 = arith.truncf %202 : vector<8x128xf32> to vector<8x128xbf16>
    %cst_71 = arith.constant dense<0.000000e+00> : vector<8x128xf32>
    %206 = tpu.matmul %205, %190, %cst_71 {dimension_numbers = #tpu.dot_dimension_numbers<[1], [0], [0], [1], [0, 0, 1, 1], [], []>} : vector<8x128xbf16>, vector<128x128xbf16>, vector<8x128xf32> -> vector<8x128xf32>
    %207 = arith.addf %204, %206 : vector<8x128xf32>
    %208 = arith.negf %207 : vector<8x128xf32>
    %209 = math.exp %208 : vector<8x128xf32>
    %cst_72 = arith.constant 1.000000e+00 : f32
    %210 = vector.broadcast %cst_72 : f32 to vector<8x128xf32>
    %211 = arith.addf %210, %209 : vector<8x128xf32>
    %212 = arith.divf %210, %211 : vector<8x128xf32>
    %c64_i32_73 = arith.constant 64 : i32
    %213 = tpu.dynamic_rotate %212 by %c64_i32_73 dim 1 : vector<8x128xf32>, i32 -> vector<8x128xf32>
    %214 = arith.addf %206, %194 : vector<8x128xf32>
    %215 = arith.mulf %213, %214 : vector<8x128xf32>
    %216 = arith.addf %204, %215 : vector<8x128xf32>
    %217 = math.tanh %216 : vector<8x128xf32>
    %c96_i32_74 = arith.constant 96 : i32
    %218 = tpu.dynamic_rotate %212 by %c96_i32_74 dim 1 : vector<8x128xf32>, i32 -> vector<8x128xf32>
    %219 = arith.subf %202, %217 : vector<8x128xf32>
    %220 = arith.mulf %218, %219 : vector<8x128xf32>
    %221 = arith.addf %217, %220 : vector<8x128xf32>
    %222 = vector.extract_strided_slice %201 {offsets = [1, 0, 0], sizes = [1, 8, 128], strides = [1, 1, 1]} : vector<8x8x128xf32> to vector<1x8x128xf32>
    %223 = vector.shape_cast %222 : vector<1x8x128xf32> to vector<8x128xf32>
    %224 = arith.truncf %221 : vector<8x128xf32> to vector<8x128xbf16>
    %cst_75 = arith.constant dense<0.000000e+00> : vector<8x128xf32>
    %225 = tpu.matmul %224, %190, %cst_75 {dimension_numbers = #tpu.dot_dimension_numbers<[1], [0], [0], [1], [0, 0, 1, 1], [], []>} : vector<8x128xbf16>, vector<128x128xbf16>, vector<8x128xf32> -> vector<8x128xf32>
    %226 = arith.addf %223, %225 : vector<8x128xf32>
    %227 = arith.negf %226 : vector<8x128xf32>
    %228 = math.exp %227 : vector<8x128xf32>
    %cst_76 = arith.constant 1.000000e+00 : f32
    %229 = vector.broadcast %cst_76 : f32 to vector<8x128xf32>
    %230 = arith.addf %229, %228 : vector<8x128xf32>
    %231 = arith.divf %229, %230 : vector<8x128xf32>
    %c64_i32_77 = arith.constant 64 : i32
    %232 = tpu.dynamic_rotate %231 by %c64_i32_77 dim 1 : vector<8x128xf32>, i32 -> vector<8x128xf32>
    %233 = arith.addf %225, %194 : vector<8x128xf32>
    %234 = arith.mulf %232, %233 : vector<8x128xf32>
    %235 = arith.addf %223, %234 : vector<8x128xf32>
    %236 = math.tanh %235 : vector<8x128xf32>
    %c96_i32_78 = arith.constant 96 : i32
    %237 = tpu.dynamic_rotate %231 by %c96_i32_78 dim 1 : vector<8x128xf32>, i32 -> vector<8x128xf32>
    %238 = arith.subf %221, %236 : vector<8x128xf32>
    %239 = arith.mulf %237, %238 : vector<8x128xf32>
    %240 = arith.addf %236, %239 : vector<8x128xf32>
    %241 = vector.extract_strided_slice %201 {offsets = [2, 0, 0], sizes = [1, 8, 128], strides = [1, 1, 1]} : vector<8x8x128xf32> to vector<1x8x128xf32>
    %242 = vector.shape_cast %241 : vector<1x8x128xf32> to vector<8x128xf32>
    %243 = arith.truncf %240 : vector<8x128xf32> to vector<8x128xbf16>
    %cst_79 = arith.constant dense<0.000000e+00> : vector<8x128xf32>
    %244 = tpu.matmul %243, %190, %cst_79 {dimension_numbers = #tpu.dot_dimension_numbers<[1], [0], [0], [1], [0, 0, 1, 1], [], []>} : vector<8x128xbf16>, vector<128x128xbf16>, vector<8x128xf32> -> vector<8x128xf32>
    %245 = arith.addf %242, %244 : vector<8x128xf32>
    %246 = arith.negf %245 : vector<8x128xf32>
    %247 = math.exp %246 : vector<8x128xf32>
    %cst_80 = arith.constant 1.000000e+00 : f32
    %248 = vector.broadcast %cst_80 : f32 to vector<8x128xf32>
    %249 = arith.addf %248, %247 : vector<8x128xf32>
    %250 = arith.divf %248, %249 : vector<8x128xf32>
    %c64_i32_81 = arith.constant 64 : i32
    %251 = tpu.dynamic_rotate %250 by %c64_i32_81 dim 1 : vector<8x128xf32>, i32 -> vector<8x128xf32>
    %252 = arith.addf %244, %194 : vector<8x128xf32>
    %253 = arith.mulf %251, %252 : vector<8x128xf32>
    %254 = arith.addf %242, %253 : vector<8x128xf32>
    %255 = math.tanh %254 : vector<8x128xf32>
    %c96_i32_82 = arith.constant 96 : i32
    %256 = tpu.dynamic_rotate %250 by %c96_i32_82 dim 1 : vector<8x128xf32>, i32 -> vector<8x128xf32>
    %257 = arith.subf %240, %255 : vector<8x128xf32>
    %258 = arith.mulf %256, %257 : vector<8x128xf32>
    %259 = arith.addf %255, %258 : vector<8x128xf32>
    %260 = vector.extract_strided_slice %201 {offsets = [3, 0, 0], sizes = [1, 8, 128], strides = [1, 1, 1]} : vector<8x8x128xf32> to vector<1x8x128xf32>
    %261 = vector.shape_cast %260 : vector<1x8x128xf32> to vector<8x128xf32>
    %262 = arith.truncf %259 : vector<8x128xf32> to vector<8x128xbf16>
    %cst_83 = arith.constant dense<0.000000e+00> : vector<8x128xf32>
    %263 = tpu.matmul %262, %190, %cst_83 {dimension_numbers = #tpu.dot_dimension_numbers<[1], [0], [0], [1], [0, 0, 1, 1], [], []>} : vector<8x128xbf16>, vector<128x128xbf16>, vector<8x128xf32> -> vector<8x128xf32>
    %264 = arith.addf %261, %263 : vector<8x128xf32>
    %265 = arith.negf %264 : vector<8x128xf32>
    %266 = math.exp %265 : vector<8x128xf32>
    %cst_84 = arith.constant 1.000000e+00 : f32
    %267 = vector.broadcast %cst_84 : f32 to vector<8x128xf32>
    %268 = arith.addf %267, %266 : vector<8x128xf32>
    %269 = arith.divf %267, %268 : vector<8x128xf32>
    %c64_i32_85 = arith.constant 64 : i32
    %270 = tpu.dynamic_rotate %269 by %c64_i32_85 dim 1 : vector<8x128xf32>, i32 -> vector<8x128xf32>
    %271 = arith.addf %263, %194 : vector<8x128xf32>
    %272 = arith.mulf %270, %271 : vector<8x128xf32>
    %273 = arith.addf %261, %272 : vector<8x128xf32>
    %274 = math.tanh %273 : vector<8x128xf32>
    %c96_i32_86 = arith.constant 96 : i32
    %275 = tpu.dynamic_rotate %269 by %c96_i32_86 dim 1 : vector<8x128xf32>, i32 -> vector<8x128xf32>
    %276 = arith.subf %259, %274 : vector<8x128xf32>
    %277 = arith.mulf %275, %276 : vector<8x128xf32>
    %278 = arith.addf %274, %277 : vector<8x128xf32>
    %279 = vector.extract_strided_slice %201 {offsets = [4, 0, 0], sizes = [1, 8, 128], strides = [1, 1, 1]} : vector<8x8x128xf32> to vector<1x8x128xf32>
    %280 = vector.shape_cast %279 : vector<1x8x128xf32> to vector<8x128xf32>
    %281 = arith.truncf %278 : vector<8x128xf32> to vector<8x128xbf16>
    %cst_87 = arith.constant dense<0.000000e+00> : vector<8x128xf32>
    %282 = tpu.matmul %281, %190, %cst_87 {dimension_numbers = #tpu.dot_dimension_numbers<[1], [0], [0], [1], [0, 0, 1, 1], [], []>} : vector<8x128xbf16>, vector<128x128xbf16>, vector<8x128xf32> -> vector<8x128xf32>
    %283 = arith.addf %280, %282 : vector<8x128xf32>
    %284 = arith.negf %283 : vector<8x128xf32>
    %285 = math.exp %284 : vector<8x128xf32>
    %cst_88 = arith.constant 1.000000e+00 : f32
    %286 = vector.broadcast %cst_88 : f32 to vector<8x128xf32>
    %287 = arith.addf %286, %285 : vector<8x128xf32>
    %288 = arith.divf %286, %287 : vector<8x128xf32>
    %c64_i32_89 = arith.constant 64 : i32
    %289 = tpu.dynamic_rotate %288 by %c64_i32_89 dim 1 : vector<8x128xf32>, i32 -> vector<8x128xf32>
    %290 = arith.addf %282, %194 : vector<8x128xf32>
    %291 = arith.mulf %289, %290 : vector<8x128xf32>
    %292 = arith.addf %280, %291 : vector<8x128xf32>
    %293 = math.tanh %292 : vector<8x128xf32>
    %c96_i32_90 = arith.constant 96 : i32
    %294 = tpu.dynamic_rotate %288 by %c96_i32_90 dim 1 : vector<8x128xf32>, i32 -> vector<8x128xf32>
    %295 = arith.subf %278, %293 : vector<8x128xf32>
    %296 = arith.mulf %294, %295 : vector<8x128xf32>
    %297 = arith.addf %293, %296 : vector<8x128xf32>
    %298 = vector.extract_strided_slice %201 {offsets = [5, 0, 0], sizes = [1, 8, 128], strides = [1, 1, 1]} : vector<8x8x128xf32> to vector<1x8x128xf32>
    %299 = vector.shape_cast %298 : vector<1x8x128xf32> to vector<8x128xf32>
    %300 = arith.truncf %297 : vector<8x128xf32> to vector<8x128xbf16>
    %cst_91 = arith.constant dense<0.000000e+00> : vector<8x128xf32>
    %301 = tpu.matmul %300, %190, %cst_91 {dimension_numbers = #tpu.dot_dimension_numbers<[1], [0], [0], [1], [0, 0, 1, 1], [], []>} : vector<8x128xbf16>, vector<128x128xbf16>, vector<8x128xf32> -> vector<8x128xf32>
    %302 = arith.addf %299, %301 : vector<8x128xf32>
    %303 = arith.negf %302 : vector<8x128xf32>
    %304 = math.exp %303 : vector<8x128xf32>
    %cst_92 = arith.constant 1.000000e+00 : f32
    %305 = vector.broadcast %cst_92 : f32 to vector<8x128xf32>
    %306 = arith.addf %305, %304 : vector<8x128xf32>
    %307 = arith.divf %305, %306 : vector<8x128xf32>
    %c64_i32_93 = arith.constant 64 : i32
    %308 = tpu.dynamic_rotate %307 by %c64_i32_93 dim 1 : vector<8x128xf32>, i32 -> vector<8x128xf32>
    %309 = arith.addf %301, %194 : vector<8x128xf32>
    %310 = arith.mulf %308, %309 : vector<8x128xf32>
    %311 = arith.addf %299, %310 : vector<8x128xf32>
    %312 = math.tanh %311 : vector<8x128xf32>
    %c96_i32_94 = arith.constant 96 : i32
    %313 = tpu.dynamic_rotate %307 by %c96_i32_94 dim 1 : vector<8x128xf32>, i32 -> vector<8x128xf32>
    %314 = arith.subf %297, %312 : vector<8x128xf32>
    %315 = arith.mulf %313, %314 : vector<8x128xf32>
    %316 = arith.addf %312, %315 : vector<8x128xf32>
    %317 = vector.extract_strided_slice %201 {offsets = [6, 0, 0], sizes = [1, 8, 128], strides = [1, 1, 1]} : vector<8x8x128xf32> to vector<1x8x128xf32>
    %318 = vector.shape_cast %317 : vector<1x8x128xf32> to vector<8x128xf32>
    %319 = arith.truncf %316 : vector<8x128xf32> to vector<8x128xbf16>
    %cst_95 = arith.constant dense<0.000000e+00> : vector<8x128xf32>
    %320 = tpu.matmul %319, %190, %cst_95 {dimension_numbers = #tpu.dot_dimension_numbers<[1], [0], [0], [1], [0, 0, 1, 1], [], []>} : vector<8x128xbf16>, vector<128x128xbf16>, vector<8x128xf32> -> vector<8x128xf32>
    %321 = arith.addf %318, %320 : vector<8x128xf32>
    %322 = arith.negf %321 : vector<8x128xf32>
    %323 = math.exp %322 : vector<8x128xf32>
    %cst_96 = arith.constant 1.000000e+00 : f32
    %324 = vector.broadcast %cst_96 : f32 to vector<8x128xf32>
    %325 = arith.addf %324, %323 : vector<8x128xf32>
    %326 = arith.divf %324, %325 : vector<8x128xf32>
    %c64_i32_97 = arith.constant 64 : i32
    %327 = tpu.dynamic_rotate %326 by %c64_i32_97 dim 1 : vector<8x128xf32>, i32 -> vector<8x128xf32>
    %328 = arith.addf %320, %194 : vector<8x128xf32>
    %329 = arith.mulf %327, %328 : vector<8x128xf32>
    %330 = arith.addf %318, %329 : vector<8x128xf32>
    %331 = math.tanh %330 : vector<8x128xf32>
    %c96_i32_98 = arith.constant 96 : i32
    %332 = tpu.dynamic_rotate %326 by %c96_i32_98 dim 1 : vector<8x128xf32>, i32 -> vector<8x128xf32>
    %333 = arith.subf %316, %331 : vector<8x128xf32>
    %334 = arith.mulf %332, %333 : vector<8x128xf32>
    %335 = arith.addf %331, %334 : vector<8x128xf32>
    %336 = vector.extract_strided_slice %201 {offsets = [7, 0, 0], sizes = [1, 8, 128], strides = [1, 1, 1]} : vector<8x8x128xf32> to vector<1x8x128xf32>
    %337 = vector.shape_cast %336 : vector<1x8x128xf32> to vector<8x128xf32>
    %338 = arith.truncf %335 : vector<8x128xf32> to vector<8x128xbf16>
    %cst_99 = arith.constant dense<0.000000e+00> : vector<8x128xf32>
    %339 = tpu.matmul %338, %190, %cst_99 {dimension_numbers = #tpu.dot_dimension_numbers<[1], [0], [0], [1], [0, 0, 1, 1], [], []>} : vector<8x128xbf16>, vector<128x128xbf16>, vector<8x128xf32> -> vector<8x128xf32>
    %340 = arith.addf %337, %339 : vector<8x128xf32>
    %341 = arith.negf %340 : vector<8x128xf32>
    %342 = math.exp %341 : vector<8x128xf32>
    %cst_100 = arith.constant 1.000000e+00 : f32
    %343 = vector.broadcast %cst_100 : f32 to vector<8x128xf32>
    %344 = arith.addf %343, %342 : vector<8x128xf32>
    %345 = arith.divf %343, %344 : vector<8x128xf32>
    %c64_i32_101 = arith.constant 64 : i32
    %346 = tpu.dynamic_rotate %345 by %c64_i32_101 dim 1 : vector<8x128xf32>, i32 -> vector<8x128xf32>
    %347 = arith.addf %339, %194 : vector<8x128xf32>
    %348 = arith.mulf %346, %347 : vector<8x128xf32>
    %349 = arith.addf %337, %348 : vector<8x128xf32>
    %350 = math.tanh %349 : vector<8x128xf32>
    %c96_i32_102 = arith.constant 96 : i32
    %351 = tpu.dynamic_rotate %345 by %c96_i32_102 dim 1 : vector<8x128xf32>, i32 -> vector<8x128xf32>
    %352 = arith.subf %335, %350 : vector<8x128xf32>
    %353 = arith.mulf %351, %352 : vector<8x128xf32>
    %354 = arith.addf %350, %353 : vector<8x128xf32>
    %355 = arith.truncf %354 : vector<8x128xf32> to vector<8x128xbf16>
    %c0_103 = arith.constant 0 : index
    %c0_104 = arith.constant 0 : index
    %356 = vector.load %arg9[%c0_103, %c0_104] : memref<128x128xbf16, #tpu.memory_space<vmem>>, vector<128x128xbf16>
    %cst_105 = arith.constant dense<0.000000e+00> : vector<8x128xf32>
    %357 = tpu.matmul %355, %356, %cst_105 {dimension_numbers = #tpu.dot_dimension_numbers<[1], [0], [0], [1], [0, 0, 1, 1], [], []>} : vector<8x128xbf16>, vector<128x128xbf16>, vector<8x128xf32> -> vector<8x128xf32>
    %c0_106 = arith.constant 0 : index
    %c0_107 = arith.constant 0 : index
    %358 = vector.load %arg10[%c0_106, %c0_107] : memref<1x128xf32, #tpu.memory_space<vmem>>, vector<1x128xf32>
    %359 = vector.broadcast %358 : vector<1x128xf32> to vector<8x128xf32>
    %360 = arith.addf %357, %359 : vector<8x128xf32>
    %c0_108 = arith.constant 0 : index
    %c0_109 = arith.constant 0 : index
    %361 = vector.load %arg11[%c0_108, %c0_109] : memref<8x128xf32, #tpu.memory_space<vmem>>, vector<8x128xf32>
    tpu.vector_store %arg11[%c0_108, %c0_109], %360 {strides = array<i32>} : memref<8x128xf32, #tpu.memory_space<vmem>>, vector<8x128xf32>,
    return
  }
}

</mosaic_0001>

<llo_original>
// kernel: tpu_custom_call.1
$region0: #{tpu_custom_call.1}
  #allocation0 [shape = 'u32[]', space=smem, size = 0x4, offset = 0x4, fixed_abs, tag = 'smem constant byte address 0x4 - core index']
  #allocation1 [shape = 'u32[144,128]{1,0:T(1,128)}', space=vmem, size = 0x12000, scoped, tag = 'internal scratch']
  #allocation2 [shape = 'f32[8,8,128]{2,1,0:T(8,128)}', space=vmem, size = 0x8000, scoped, tag = 'scratch operand']
  %s0 = inlined_call_operand.hbm [shape: bf16[8,8,128], index: 0, kind: input, shape index: {}]
  %s1 = inlined_call_operand.hbm [shape: bf16[128,128], index: 1, kind: input, shape index: {}]
  %s2 = inlined_call_operand.hbm [shape: bf16[128,128], index: 2, kind: input, shape index: {}]
  %s3 = inlined_call_operand.vmem [shape: f32[1,128], index: 3, kind: input, shape index: {}]
  %s4 = inlined_call_operand.vmem [shape: f32[1,128], index: 4, kind: input, shape index: {}]
  %s5 = inlined_call_operand.hbm [shape: bf16[128,128], index: 5, kind: input, shape index: {}]
  %s6 = inlined_call_operand.hbm [shape: bf16[128,128], index: 6, kind: input, shape index: {}]
  %s7 = inlined_call_operand.vmem [shape: f32[1,128], index: 7, kind: input, shape index: {}]
  %s8 = inlined_call_operand.vmem [shape: f32[1,128], index: 8, kind: input, shape index: {}]
  %s9 = inlined_call_operand.hbm [shape: bf16[128,128], index: 9, kind: input, shape index: {}]
  %s10 = inlined_call_operand.vmem [shape: f32[1,128], index: 10, kind: input, shape index: {}]
  %s11 = inlined_call_operand.hbm [shape: f32[8,128], index: 11, kind: output, shape index: {}]
  %s12 = sld [smem:[#allocation0]]
  $region78: #{tpu_custom_call.1} parent=0
    _
  %s14 = ssub.s32 1, %s12
  %s15 = scalar_select 0, %s14, %s12
  $region1: #{tpu_custom_call.1} parent=0
    #allocation3 [shape = 'u8[16384]{0}', space=vmem, size = 0x4000, scoped, tag = 'input window, operand 0, single buffered']
    #allocation4 [shape = 's32[1]{0}', space=sflag, size = 0x4, scoped, tag = 'scoped memory for tpu_custom_call.1']
    #allocation5 [shape = 's32[1]{0}', space=sflag, size = 0x4, scoped, tag = 'scoped memory for tpu_custom_call.1']
    #allocation6 [shape = 'u8[32768]{0}', space=vmem, size = 0x8000, scoped, tag = 'input window, operand 1, single buffered']
    #allocation7 [shape = 's32[1]{0}', space=sflag, size = 0x4, scoped, tag = 'scoped memory for tpu_custom_call.1']
    #allocation8 [shape = 'u8[32768]{0}', space=vmem, size = 0x8000, scoped, tag = 'input window, operand 2, single buffered']
    #allocation9 [shape = 'u8[32768]{0}', space=vmem, size = 0x8000, scoped, tag = 'input window, operand 5, single buffered']
    #allocation10 [shape = 's32[1]{0}', space=sflag, size = 0x4, scoped, tag = 'scoped memory for tpu_custom_call.1']
    #allocation11 [shape = 'u8[32768]{0}', space=vmem, size = 0x8000, scoped, tag = 'input window, operand 6, single buffered']
    #allocation12 [shape = 'u8[32768]{0}', space=vmem, size = 0x8000, scoped, tag = 'input window, operand 9, single buffered']
    #allocation13 [shape = 's32[1]{0}', space=sflag, size = 0x4, scoped, tag = 'scoped memory for tpu_custom_call.1']
    #allocation14 [shape = 'u8[4096]{0}', space=vmem, size = 0x1000, scoped, tag = 'output window, operand 0, single buffered']
    %16 = vsyncpa [#allocation4], 0
    %17 = vsyncpa [#allocation7], 0
    %18 = vsyncpa [#allocation10], 0
    %19 = vsyncpa [#allocation13], 0
    %20 = vsyncpa [#allocation5], 0
    // Predicated region
    $region2: #{tpu_custom_call.1} parent=1 // pred_check
      _
    $region3: #{tpu_custom_call.1} parent=1 // pred_check_branch
      %22 = sbr.rel (0) target = $region5
    $region4: #{tpu_custom_call.1} parent=1 // pred_region
      %s24 = ssub.s32 512, 512
      %25 = vsyncadd [#allocation4], %s24
      %s26 = sshll.u32 [#allocation3], 4
      %s27 = int_to_ptr.vmem [resolvable:$true] %s26
      %32 = dma.hbm_to_vmem [thread:$0]  %s0, 512, %s27, [#allocation4], 64, 64, 4
    $region5: #{tpu_custom_call.1} parent=1 // pred_fallthru
      _
    // Predicated region
    $region6: #{tpu_custom_call.1} parent=1 // pred_check
      _
    $region7: #{tpu_custom_call.1} parent=1 // pred_check_branch
      %34 = sbr.rel (0) target = $region9
    $region8: #{tpu_custom_call.1} parent=1 // pred_region
      %s36 = ssub.s32 1024, 1024
      %37 = vsyncadd [#allocation7], %s36
      %s38 = sshll.u32 [#allocation6], 4
      %s39 = int_to_ptr.vmem [resolvable:$true] %s38
      %44 = dma.hbm_to_vmem [thread:$0]  %s1, 1024, %s39, [#allocation7], 64, 64, 4
    $region9: #{tpu_custom_call.1} parent=1 // pred_fallthru
      _
    // Predicated region
    $region10: #{tpu_custom_call.1} parent=1 // pred_check
      _
    $region11: #{tpu_custom_call.1} parent=1 // pred_check_branch
      %46 = sbr.rel (0) target = $region13
    $region12: #{tpu_custom_call.1} parent=1 // pred_region
      %s48 = ssub.s32 1024, 1024
      %49 = vsyncadd [#allocation7], %s48
      %s50 = sshll.u32 [#allocation8], 4
      %s51 = int_to_ptr.vmem [resolvable:$true] %s50
      %56 = dma.hbm_to_vmem [thread:$0]  %s2, 1024, %s51, [#allocation7], 64, 64, 4
    $region13: #{tpu_custom_call.1} parent=1 // pred_fallthru
      _
    // Predicated region
    $region14: #{tpu_custom_call.1} parent=1 // pred_check
      _
    $region15: #{tpu_custom_call.1} parent=1 // pred_check_branch
      %58 = sbr.rel (0) target = $region17
    $region16: #{tpu_custom_call.1} parent=1 // pred_region
      _
    $region17: #{tpu_custom_call.1} parent=1 // pred_fallthru
      _
    // Predicated region
    $region18: #{tpu_custom_call.1} parent=1 // pred_check
      _
    $region19: #{tpu_custom_call.1} parent=1 // pred_check_branch
      %60 = sbr.rel (0) target = $region21
    $region20: #{tpu_custom_call.1} parent=1 // pred_region
      _
    $region21: #{tpu_custom_call.1} parent=1 // pred_fallthru
      _
    // Predicated region
    $region22: #{tpu_custom_call.1} parent=1 // pred_check
      _
    $region23: #{tpu_custom_call.1} parent=1 // pred_check_branch
      %62 = sbr.rel (0) target = $region25
    $region24: #{tpu_custom_call.1} parent=1 // pred_region
      %s64 = ssub.s32 1024, 1024
      %65 = vsyncadd [#allocation10], %s64
      %s66 = sshll.u32 [#allocation9], 4
      %s67 = int_to_ptr.vmem [resolvable:$true] %s66
      %72 = dma.hbm_to_vmem [thread:$0]  %s5, 1024, %s67, [#allocation10], 64, 64, 4
    $region25: #{tpu_custom_call.1} parent=1 // pred_fallthru
      _
    // Predicated region
    $region26: #{tpu_custom_call.1} parent=1 // pred_check
      _
    $region27: #{tpu_custom_call.1} parent=1 // pred_check_branch
      %74 = sbr.rel (0) target = $region29
    $region28: #{tpu_custom_call.1} parent=1 // pred_region
      %s76 = ssub.s32 1024, 1024
      %77 = vsyncadd [#allocation10], %s76
      %s78 = sshll.u32 [#allocation11], 4
      %s79 = int_to_ptr.vmem [resolvable:$true] %s78
      %84 = dma.hbm_to_vmem [thread:$0]  %s6, 1024, %s79, [#allocation10], 64, 64, 4
    $region29: #{tpu_custom_call.1} parent=1 // pred_fallthru
      _
    // Predicated region
    $region30: #{tpu_custom_call.1} parent=1 // pred_check
      _
    $region31: #{tpu_custom_call.1} parent=1 // pred_check_branch
      %86 = sbr.rel (0) target = $region33
    $region32: #{tpu_custom_call.1} parent=1 // pred_region
      _
    $region33: #{tpu_custom_call.1} parent=1 // pred_fallthru
      _
    // Predicated region
    $region34: #{tpu_custom_call.1} parent=1 // pred_check
      _
    $region35: #{tpu_custom_call.1} parent=1 // pred_check_branch
      %88 = sbr.rel (0) target = $region37
    $region36: #{tpu_custom_call.1} parent=1 // pred_region
      _
    $region37: #{tpu_custom_call.1} parent=1 // pred_fallthru
      _
    // Predicated region
    $region38: #{tpu_custom_call.1} parent=1 // pred_check
      _
    $region39: #{tpu_custom_call.1} parent=1 // pred_check_branch
      %90 = sbr.rel (0) target = $region41
    $region40: #{tpu_custom_call.1} parent=1 // pred_region
      %s92 = ssub.s32 1024, 1024
      %93 = vsyncadd [#allocation13], %s92
      %s94 = sshll.u32 [#allocation12], 4
      %s95 = int_to_ptr.vmem [resolvable:$true] %s94
      %100 = dma.hbm_to_vmem [thread:$0]  %s9, 1024, %s95, [#allocation13], 64, 64, 4
    $region41: #{tpu_custom_call.1} parent=1 // pred_fallthru
      _
    // Predicated region
    $region42: #{tpu_custom_call.1} parent=1 // pred_check
      _
    $region43: #{tpu_custom_call.1} parent=1 // pred_check_branch
      %102 = sbr.rel (0) target = $region45
    $region44: #{tpu_custom_call.1} parent=1 // pred_region
      _
    $region45: #{tpu_custom_call.1} parent=1 // pred_fallthru
      _
    // Predicated region
    $region46: #{tpu_custom_call.1} parent=1 // pred_check
      _
    $region47: #{tpu_custom_call.1} parent=1 // pred_check_branch
      %104 = sbr.rel (0) target = $region49
    $region48: #{tpu_custom_call.1} parent=1 // pred_region
      %105 = dma.done [#allocation4], 512
    $region49: #{tpu_custom_call.1} parent=1 // pred_fallthru
      _
    // Predicated region
    $region50: #{tpu_custom_call.1} parent=1 // pred_check
      _
    $region51: #{tpu_custom_call.1} parent=1 // pred_check_branch
      %107 = sbr.rel (0) target = $region53
    $region52: #{tpu_custom_call.1} parent=1 // pred_region
      %108 = dma.done [#allocation7], 1024
    $region53: #{tpu_custom_call.1} parent=1 // pred_fallthru
      _
    // Predicated region
    $region54: #{tpu_custom_call.1} parent=1 // pred_check
      _
    $region55: #{tpu_custom_call.1} parent=1 // pred_check_branch
      %110 = sbr.rel (0) target = $region57
    $region56: #{tpu_custom_call.1} parent=1 // pred_region
      %111 = dma.done [#allocation7], 1024
    $region57: #{tpu_custom_call.1} parent=1 // pred_fallthru
      _
    // Predicated region
    $region58: #{tpu_custom_call.1} parent=1 // pred_check
      _
    $region59: #{tpu_custom_call.1} parent=1 // pred_check_branch
      %113 = sbr.rel (0) target = $region61
    $region60: #{tpu_custom_call.1} parent=1 // pred_region
      %114 = dma.done [#allocation10], 1024
    $region61: #{tpu_custom_call.1} parent=1 // pred_fallthru
      _
    // Predicated region
    $region62: #{tpu_custom_call.1} parent=1 // pred_check
      _
    $region63: #{tpu_custom_call.1} parent=1 // pred_check_branch
      %116 = sbr.rel (0) target = $region65
    $region64: #{tpu_custom_call.1} parent=1 // pred_region
      %117 = dma.done [#allocation10], 1024
    $region65: #{tpu_custom_call.1} parent=1 // pred_fallthru
      _
    // Predicated region
    $region66: #{tpu_custom_call.1} parent=1 // pred_check
      _
    $region67: #{tpu_custom_call.1} parent=1 // pred_check_branch
      %119 = sbr.rel (0) target = $region69
    $region68: #{tpu_custom_call.1} parent=1 // pred_region
      %120 = dma.done [#allocation13], 1024
    $region69: #{tpu_custom_call.1} parent=1 // pred_fallthru
      _
    %v122 = vld [vmem:[#allocation6] sm:$0xf]
    %v123 = vld [vmem:[#allocation6 + $0x4] sm:$0xf]
    %v124 = vld [vmem:[#allocation6 + $0x8] sm:$0xf]
    %v125 = vld [vmem:[#allocation6 + $0xc] sm:$0xf]
    %v126 = vld [vmem:[#allocation6 + $0x10] sm:$0xf]
    %v127 = vld [vmem:[#allocation6 + $0x14] sm:$0xf]
    %v128 = vld [vmem:[#allocation6 + $0x18] sm:$0xf]
    %v129 = vld [vmem:[#allocation6 + $0x1c] sm:$0xf]
    %v130 = vld [vmem:[#allocation6 + $0x20] sm:$0xf]
    %v131 = vld [vmem:[#allocation6 + $0x24] sm:$0xf]
    %v132 = vld [vmem:[#allocation6 + $0x28] sm:$0xf]
    %v133 = vld [vmem:[#allocation6 + $0x2c] sm:$0xf]
    %v134 = vld [vmem:[#allocation6 + $0x30] sm:$0xf]
    %v135 = vld [vmem:[#allocation6 + $0x34] sm:$0xf]
    %v136 = vld [vmem:[#allocation6 + $0x38] sm:$0xf]
    %v137 = vld [vmem:[#allocation6 + $0x3c] sm:$0xf]
    %v138 = vld [vmem:[#allocation8] sm:$0xf]
    %v139 = vld [vmem:[#allocation8 + $0x4] sm:$0xf]
    %v140 = vld [vmem:[#allocation8 + $0x8] sm:$0xf]
    %v141 = vld [vmem:[#allocation8 + $0xc] sm:$0xf]
    %v142 = vld [vmem:[#allocation8 + $0x10] sm:$0xf]
    %v143 = vld [vmem:[#allocation8 + $0x14] sm:$0xf]
    %v144 = vld [vmem:[#allocation8 + $0x18] sm:$0xf]
    %v145 = vld [vmem:[#allocation8 + $0x1c] sm:$0xf]
    %v146 = vld [vmem:[#allocation8 + $0x20] sm:$0xf]
    %v147 = vld [vmem:[#allocation8 + $0x24] sm:$0xf]
    %v148 = vld [vmem:[#allocation8 + $0x28] sm:$0xf]
    %v149 = vld [vmem:[#allocation8 + $0x2c] sm:$0xf]
    %v150 = vld [vmem:[#allocation8 + $0x30] sm:$0xf]
    %v151 = vld [vmem:[#allocation8 + $0x34] sm:$0xf]
    %v152 = vld [vmem:[#allocation8 + $0x38] sm:$0xf]
    %v153 = vld [vmem:[#allocation8 + $0x3c] sm:$0xf]
    %v154 = vld [vmem:[%s3] sm:$0x1]
    %v155 = vld [vmem:[%s4] sm:$0x1]
    %v157 = vlaneseq
    %v158 = vshrl.u32 %v157, 7
    %v159 = vsub.s32 0, %v158
    %v160 = vrot.slane %v155, %v159
    %v162 = vld [vmem:[#allocation3] sm:$0xf]
    %v163 = vld [vmem:[#allocation3 + $0x4] sm:$0xf]
    %v164 = vld [vmem:[#allocation3 + $0x8] sm:$0xf]
    %v165 = vld [vmem:[#allocation3 + $0xc] sm:$0xf]
    %v166 = vld [vmem:[#allocation3 + $0x10] sm:$0xf]
    %v167 = vld [vmem:[#allocation3 + $0x14] sm:$0xf]
    %v168 = vld [vmem:[#allocation3 + $0x18] sm:$0xf]
    %v169 = vld [vmem:[#allocation3 + $0x1c] sm:$0xf]
    %v171 = vlaneseq
    %v172 = vshrl.u32 %v171, 7
    %v173 = vsub.s32 0, %v172
    %v174 = vrot.slane %v154, %v173
    %v184 = vunpack.c.l.b16 %v162
    %v185 = vunpack.c.l.b16 %v163
    %v186 = vunpack.c.l.b16 %v164
    %v187 = vunpack.c.l.b16 %v165
    %v188 = vunpack.c.l.b16 %v166
    %v189 = vunpack.c.l.b16 %v167
    %v190 = vunpack.c.l.b16 %v168
    %v191 = vunpack.c.l.b16 %v169
    %v192 = vpack.c.b16 %v185, %v184
    %v193 = vpack.c.b16 %v187, %v186
    %v194 = vpack.c.b16 %v189, %v188
    %v195 = vpack.c.b16 %v191, %v190
    %v216 = vunpack.c.l.b16 %v122
    %v217 = vunpack.c.l.b16 %v123
    %v218 = vunpack.c.l.b16 %v124
    %v219 = vunpack.c.l.b16 %v125
    %v220 = vunpack.c.l.b16 %v126
    %v221 = vunpack.c.l.b16 %v127
    %v222 = vunpack.c.l.b16 %v128
    %v223 = vunpack.c.l.b16 %v129
    %v224 = vunpack.c.l.b16 %v130
    %v225 = vunpack.c.l.b16 %v131
    %v226 = vunpack.c.l.b16 %v132
    %v227 = vunpack.c.l.b16 %v133
    %v228 = vunpack.c.l.b16 %v134
    %v229 = vunpack.c.l.b16 %v135
    %v230 = vunpack.c.l.b16 %v136
    %v231 = vunpack.c.l.b16 %v137
    %v232 = vpack.c.b16 %v217, %v216
    %v233 = vpack.c.b16 %v219, %v218
    %v234 = vpack.c.b16 %v221, %v220
    %v235 = vpack.c.b16 %v223, %v222
    %v236 = vpack.c.b16 %v225, %v224
    %v237 = vpack.c.b16 %v227, %v226
    %v238 = vpack.c.b16 %v229, %v228
    %v239 = vpack.c.b16 %v231, %v230
    %248 = vmatprep.subr.bf16.mxu0 0
    %249 = vmatpush1.bf16.msra.mxu0 %v232
    %250 = vmatprep.subr.bf16.mxu0 0
    %251 = vmatpush1.bf16.msra.mxu0 %v233
    %252 = vmatprep.subr.bf16.mxu0 0
    %253 = vmatpush1.bf16.msra.mxu0 %v234
    %254 = vmatprep.subr.bf16.mxu0 0
    %255 = vmatpush1.bf16.msra.mxu0 %v235
    %256 = vmatprep.subr.bf16.mxu0 0
    %257 = vmatpush1.bf16.msra.mxu0 %v236
    %258 = vmatprep.subr.bf16.mxu0 0
    %259 = vmatpush1.bf16.msra.mxu0 %v237
    %260 = vmatprep.subr.bf16.mxu0 0
    %261 = vmatpush1.bf16.msra.mxu0 %v238
    %262 = vmatprep.subr.bf16.mxu0 0
    %263 = vmatpush1.bf16.msra.mxu0 %v239
    %264 = vmatprep.subr.bf16.mxu0 0
    %265 = vmatpush1.bf16.msra.mxu0 0
    %266 = vmatprep.subr.bf16.mxu0 0
    %267 = vmatpush1.bf16.msra.mxu0 0
    %268 = vmatprep.subr.bf16.mxu0 0
    %269 = vmatpush1.bf16.msra.mxu0 0
    %270 = vmatprep.subr.bf16.mxu0 0
    %271 = vmatpush1.bf16.msra.mxu0 0
    %272 = vmatprep.subr.bf16.mxu0 0
    %273 = vmatpush1.bf16.msra.mxu0 0
    %274 = vmatprep.subr.bf16.mxu0 0
    %275 = vmatpush1.bf16.msra.mxu0 0
    %276 = vmatprep.subr.bf16.mxu0 0
    %277 = vmatpush1.bf16.msra.mxu0 0
    %278 = vmatprep.subr.bf16.mxu0 0
    %279 = vmatpush1.bf16.msra.mxu0 0
    %280 = vmatprep.mubr.bf16.mxu0 0
    %281 = vmatmul.mubr.bf16.gmra.mrb[0].mxu0 %v192
    %v282 = vpop.f32.mrb[0].mxu0
    %v283 = vadd.f32 %v174, %v282
    %v284 = vpop.f32.mrb[0].mxu0
    %v285 = vpop.f32.mrb[0].mxu0
    %v286 = vadd.f32 %v174, %v285
    %v287 = vpop.f32.mrb[0].mxu0
    %288 = vmatprep.mubr.bf16.mxu0 0
    %289 = vmatmul.mubr.bf16.gmra.mrb[0].mxu0 %v193
    %v290 = vpop.f32.mrb[0].mxu0
    %v291 = vadd.f32 %v174, %v290
    %v292 = vpop.f32.mrb[0].mxu0
    %v293 = vpop.f32.mrb[0].mxu0
    %v294 = vadd.f32 %v174, %v293
    %v295 = vpop.f32.mrb[0].mxu0
    %296 = vmatprep.mubr.bf16.mxu0 0
    %297 = vmatmul.mubr.bf16.gmra.mrb[0].mxu0 %v194
    %v298 = vpop.f32.mrb[0].mxu0
    %v299 = vadd.f32 %v174, %v298
    %v300 = vpop.f32.mrb[0].mxu0
    %v301 = vpop.f32.mrb[0].mxu0
    %v302 = vadd.f32 %v174, %v301
    %v303 = vpop.f32.mrb[0].mxu0
    %304 = vmatprep.mubr.bf16.mxu0 0
    %305 = vmatmul.mubr.bf16.gmra.mrb[0].mxu0 %v195
    %v306 = vpop.f32.mrb[0].mxu0
    %v307 = vadd.f32 %v174, %v306
    %v308 = vpop.f32.mrb[0].mxu0
    %v309 = vpop.f32.mrb[0].mxu0
    %v310 = vadd.f32 %v174, %v309
    %v311 = vpop.f32.mrb[0].mxu0
    %312 = vdwg.mxu0
    %v329 = vunpack.c.l.b16 %v138
    %v330 = vunpack.c.l.b16 %v139
    %v331 = vunpack.c.l.b16 %v140
    %v332 = vunpack.c.l.b16 %v141
    %v333 = vunpack.c.l.b16 %v142
    %v334 = vunpack.c.l.b16 %v143
    %v335 = vunpack.c.l.b16 %v144
    %v336 = vunpack.c.l.b16 %v145
    %v337 = vunpack.c.l.b16 %v146
    %v338 = vunpack.c.l.b16 %v147
    %v339 = vunpack.c.l.b16 %v148
    %v340 = vunpack.c.l.b16 %v149
    %v341 = vunpack.c.l.b16 %v150
    %v342 = vunpack.c.l.b16 %v151
    %v343 = vunpack.c.l.b16 %v152
    %v344 = vunpack.c.l.b16 %v153
    %v345 = vpack.c.b16 %v330, %v329
    %v346 = vpack.c.b16 %v332, %v331
    %v347 = vpack.c.b16 %v334, %v333
    %v348 = vpack.c.b16 %v336, %v335
    %v349 = vpack.c.b16 %v338, %v337
    %v350 = vpack.c.b16 %v340, %v339
    %v351 = vpack.c.b16 %v342, %v341
    %v352 = vpack.c.b16 %v344, %v343
    %361 = vmatprep.subr.bf16.mxu0 0
    %362 = vmatpush1.bf16.msra.mxu0 %v345
    %363 = vmatprep.subr.bf16.mxu0 0
    %364 = vmatpush1.bf16.msra.mxu0 %v346
    %365 = vmatprep.subr.bf16.mxu0 0
    %366 = vmatpush1.bf16.msra.mxu0 %v347
    %367 = vmatprep.subr.bf16.mxu0 0
    %368 = vmatpush1.bf16.msra.mxu0 %v348
    %369 = vmatprep.subr.bf16.mxu0 0
    %370 = vmatpush1.bf16.msra.mxu0 %v349
    %371 = vmatprep.subr.bf16.mxu0 0
    %372 = vmatpush1.bf16.msra.mxu0 %v350
    %373 = vmatprep.subr.bf16.mxu0 0
    %374 = vmatpush1.bf16.msra.mxu0 %v351
    %375 = vmatprep.subr.bf16.mxu0 0
    %376 = vmatpush1.bf16.msra.mxu0 %v352
    %377 = vmatprep.subr.bf16.mxu0 0
    %378 = vmatpush1.bf16.msra.mxu0 0
    %379 = vmatprep.subr.bf16.mxu0 0
    %380 = vmatpush1.bf16.msra.mxu0 0
    %381 = vmatprep.subr.bf16.mxu0 0
    %382 = vmatpush1.bf16.msra.mxu0 0
    %383 = vmatprep.subr.bf16.mxu0 0
    %384 = vmatpush1.bf16.msra.mxu0 0
    %385 = vmatprep.subr.bf16.mxu0 0
    %386 = vmatpush1.bf16.msra.mxu0 0
    %387 = vmatprep.subr.bf16.mxu0 0
    %388 = vmatpush1.bf16.msra.mxu0 0
    %389 = vmatprep.subr.bf16.mxu0 0
    %390 = vmatpush1.bf16.msra.mxu0 0
    %391 = vmatprep.subr.bf16.mxu0 0
    %392 = vmatpush1.bf16.msra.mxu0 0
    %393 = vmatprep.mubr.bf16.mxu0 0
    %394 = vmatmul.mubr.bf16.gmra.mrb[0].mxu0 0
    %v395 = vpop.f32.mrb[0].mxu0
    %v396 = vadd.f32 0.0, %v395
    %v397 = vpop.f32.mrb[0].mxu0
    %v398 = vpop.f32.mrb[0].mxu0
    %v399 = vpop.f32.mrb[0].mxu0
    %400 = vdwg.mxu0
    %v401 = vadd.f32 %v283, %v396
    %v402 = vxor.u32 %v401, 2147483648
    %v403 = vmul.f32 %v402, 1.442695
    %v404 = vpow.pop %v403
    %v405 = vadd.f32 %v404, 1.0
    %v406 = vrcp.pop %v405
    %v407 = vmul.f32 1.0, %v406
    %408 = vrot.lane.b32.xlu0 %v407, 64
    %v409 = vpop.permute.xlu0 %408
    %v410 = vadd.f32 %v396, %v160
    %v411 = vmul.f32 %v409, %v410
    %v412 = vadd.f32 %v283, %v411
    %v413 = vtanh.pop %v412
    %414 = vrot.lane.b32.xlu0 %v407, 96
    %v415 = vpop.permute.xlu0 %414
    %v416 = vsub.f32 0.0, %v413
    %v417 = vmul.f32 %v415, %v416
    %v418 = vadd.f32 %v413, %v417
    %419 = vst [vmem:[#allocation2] sm:$0xff] %v418
    %v420 = vpack.c.bf16 %v418, %v418
    %421 = vmatprep.subr.bf16.mxu0 0
    %422 = vmatpush1.bf16.msra.mxu0 %v345
    %423 = vmatprep.subr.bf16.mxu0 0
    %424 = vmatpush1.bf16.msra.mxu0 %v346
    %425 = vmatprep.subr.bf16.mxu0 0
    %426 = vmatpush1.bf16.msra.mxu0 %v347
    %427 = vmatprep.subr.bf16.mxu0 0
    %428 = vmatpush1.bf16.msra.mxu0 %v348
    %429 = vmatprep.subr.bf16.mxu0 0
    %430 = vmatpush1.bf16.msra.mxu0 %v349
    %431 = vmatprep.subr.bf16.mxu0 0
    %432 = vmatpush1.bf16.msra.mxu0 %v350
    %433 = vmatprep.subr.bf16.mxu0 0
    %434 = vmatpush1.bf16.msra.mxu0 %v351
    %435 = vmatprep.subr.bf16.mxu0 0
    %436 = vmatpush1.bf16.msra.mxu0 %v352
    %437 = vmatprep.subr.bf16.mxu0 0
    %438 = vmatpush1.bf16.msra.mxu0 0
    %439 = vmatprep.subr.bf16.mxu0 0
    %440 = vmatpush1.bf16.msra.mxu0 0
    %441 = vmatprep.subr.bf16.mxu0 0
    %442 = vmatpush1.bf16.msra.mxu0 0
    %443 = vmatprep.subr.bf16.mxu0 0
    %444 = vmatpush1.bf16.msra.mxu0 0
    %445 = vmatprep.subr.bf16.mxu0 0
    %446 = vmatpush1.bf16.msra.mxu0 0
    %447 = vmatprep.subr.bf16.mxu0 0
    %448 = vmatpush1.bf16.msra.mxu0 0
    %449 = vmatprep.subr.bf16.mxu0 0
    %450 = vmatpush1.bf16.msra.mxu0 0
    %451 = vmatprep.subr.bf16.mxu0 0
    %452 = vmatpush1.bf16.msra.mxu0 0
    %453 = vmatprep.mubr.bf16.mxu0 0
    %454 = vmatmul.mubr.bf16.gmra.mrb[0].mxu0 %v420
    %v455 = vpop.f32.mrb[0].mxu0
    %v456 = vadd.f32 0.0, %v455
    %v457 = vpop.f32.mrb[0].mxu0
    %v458 = vpop.f32.mrb[0].mxu0
    %v459 = vpop.f32.mrb[0].mxu0
    %460 = vdwg.mxu0
    %v461 = vadd.f32 %v286, %v456
    %v462 = vxor.u32 %v461, 2147483648
    %v463 = vmul.f32 %v462, 1.442695
    %v464 = vpow.pop %v463
    %v465 = vadd.f32 %v464, 1.0
    %v466 = vrcp.pop %v465
    %v467 = vmul.f32 1.0, %v466
    %468 = vrot.lane.b32.xlu0 %v467, 64
    %v469 = vpop.permute.xlu0 %468
    %v470 = vadd.f32 %v456, %v160
    %v471 = vmul.f32 %v469, %v470
    %v472 = vadd.f32 %v286, %v471
    %v473 = vtanh.pop %v472
    %474 = vrot.lane.b32.xlu0 %v467, 96
    %v475 = vpop.permute.xlu0 %474
    %v476 = vsub.f32 %v418, %v473
    %v477 = vmul.f32 %v475, %v476
    %v478 = vadd.f32 %v473, %v477
    %s479 = scalar_lea.vmem [#allocation2], 8
    %480 = vst [vmem:[%s479] sm:$0xff] %v478
    %v481 = vpack.c.bf16 %v478, %v478
    %482 = vmatprep.subr.bf16.mxu0 0
    %483 = vmatpush1.bf16.msra.mxu0 %v345
    %484 = vmatprep.subr.bf16.mxu0 0
    %485 = vmatpush1.bf16.msra.mxu0 %v346
    %486 = vmatprep.subr.bf16.mxu0 0
    %487 = vmatpush1.bf16.msra.mxu0 %v347
    %488 = vmatprep.subr.bf16.mxu0 0
    %489 = vmatpush1.bf16.msra.mxu0 %v348
    %490 = vmatprep.subr.bf16.mxu0 0
    %491 = vmatpush1.bf16.msra.mxu0 %v349
    %492 = vmatprep.subr.bf16.mxu0 0
    %493 = vmatpush1.bf16.msra.mxu0 %v350
    %494 = vmatprep.subr.bf16.mxu0 0
    %495 = vmatpush1.bf16.msra.mxu0 %v351
    %496 = vmatprep.subr.bf16.mxu0 0
    %497 = vmatpush1.bf16.msra.mxu0 %v352
    %498 = vmatprep.subr.bf16.mxu0 0
    %499 = vmatpush1.bf16.msra.mxu0 0
    %500 = vmatprep.subr.bf16.mxu0 0
    %501 = vmatpush1.bf16.msra.mxu0 0
    %502 = vmatprep.subr.bf16.mxu0 0
    %503 = vmatpush1.bf16.msra.mxu0 0
    %504 = vmatprep.subr.bf16.mxu0 0
    %505 = vmatpush1.bf16.msra.mxu0 0
    %506 = vmatprep.subr.bf16.mxu0 0
    %507 = vmatpush1.bf16.msra.mxu0 0
    %508 = vmatprep.subr.bf16.mxu0 0
    %509 = vmatpush1.bf16.msra.mxu0 0
    %510 = vmatprep.subr.bf16.mxu0 0
    %511 = vmatpush1.bf16.msra.mxu0 0
    %512 = vmatprep.subr.bf16.mxu0 0
    %513 = vmatpush1.bf16.msra.mxu0 0
    %514 = vmatprep.mubr.bf16.mxu0 0
    %515 = vmatmul.mubr.bf16.gmra.mrb[0].mxu0 %v481
    %v516 = vpop.f32.mrb[0].mxu0
    %v517 = vadd.f32 0.0, %v516
    %v518 = vpop.f32.mrb[0].mxu0
    %v519 = vpop.f32.mrb[0].mxu0
    %v520 = vpop.f32.mrb[0].mxu0
    %521 = vdwg.mxu0
    %v522 = vadd.f32 %v291, %v517
    %v523 = vxor.u32 %v522, 2147483648
    %v524 = vmul.f32 %v523, 1.442695
    %v525 = vpow.pop %v524
    %v526 = vadd.f32 %v525, 1.0
    %v527 = vrcp.pop %v526
    %v528 = vmul.f32 1.0, %v527
    %529 = vrot.lane.b32.xlu0 %v528, 64
    %v530 = vpop.permute.xlu0 %529
    %v531 = vadd.f32 %v517, %v160
    %v532 = vmul.f32 %v530, %v531
    %v533 = vadd.f32 %v291, %v532
    %v534 = vtanh.pop %v533
    %535 = vrot.lane.b32.xlu0 %v528, 96
    %v536 = vpop.permute.xlu0 %535
    %v537 = vsub.f32 %v478, %v534
    %v538 = vmul.f32 %v536, %v537
    %v539 = vadd.f32 %v534, %v538
    %s540 = scalar_lea.vmem [#allocation2], 16
    %541 = vst [vmem:[%s540] sm:$0xff] %v539
    %v542 = vpack.c.bf16 %v539, %v539
    %543 = vmatprep.subr.bf16.mxu0 0
    %544 = vmatpush1.bf16.msra.mxu0 %v345
    %545 = vmatprep.subr.bf16.mxu0 0
    %546 = vmatpush1.bf16.msra.mxu0 %v346
    %547 = vmatprep.subr.bf16.mxu0 0
    %548 = vmatpush1.bf16.msra.mxu0 %v347
    %549 = vmatprep.subr.bf16.mxu0 0
    %550 = vmatpush1.bf16.msra.mxu0 %v348
    %551 = vmatprep.subr.bf16.mxu0 0
    %552 = vmatpush1.bf16.msra.mxu0 %v349
    %553 = vmatprep.subr.bf16.mxu0 0
    %554 = vmatpush1.bf16.msra.mxu0 %v350
    %555 = vmatprep.subr.bf16.mxu0 0
    %556 = vmatpush1.bf16.msra.mxu0 %v351
    %557 = vmatprep.subr.bf16.mxu0 0
    %558 = vmatpush1.bf16.msra.mxu0 %v352
    %559 = vmatprep.subr.bf16.mxu0 0
    %560 = vmatpush1.bf16.msra.mxu0 0
    %561 = vmatprep.subr.bf16.mxu0 0
    %562 = vmatpush1.bf16.msra.mxu0 0
    %563 = vmatprep.subr.bf16.mxu0 0
    %564 = vmatpush1.bf16.msra.mxu0 0
    %565 = vmatprep.subr.bf16.mxu0 0
    %566 = vmatpush1.bf16.msra.mxu0 0
    %567 = vmatprep.subr.bf16.mxu0 0
    %568 = vmatpush1.bf16.msra.mxu0 0
    %569 = vmatprep.subr.bf16.mxu0 0
    %570 = vmatpush1.bf16.msra.mxu0 0
    %571 = vmatprep.subr.bf16.mxu0 0
    %572 = vmatpush1.bf16.msra.mxu0 0
    %573 = vmatprep.subr.bf16.mxu0 0
    %574 = vmatpush1.bf16.msra.mxu0 0
    %575 = vmatprep.mubr.bf16.mxu0 0
    %576 = vmatmul.mubr.bf16.gmra.mrb[0].mxu0 %v542
    %v577 = vpop.f32.mrb[0].mxu0
    %v578 = vadd.f32 0.0, %v577
    %v579 = vpop.f32.mrb[0].mxu0
    %v580 = vpop.f32.mrb[0].mxu0
    %v581 = vpop.f32.mrb[0].mxu0
    %582 = vdwg.mxu0
    %v583 = vadd.f32 %v294, %v578
    %v584 = vxor.u32 %v583, 2147483648
    %v585 = vmul.f32 %v584, 1.442695
    %v586 = vpow.pop %v585
    %v587 = vadd.f32 %v586, 1.0
    %v588 = vrcp.pop %v587
    %v589 = vmul.f32 1.0, %v588
    %590 = vrot.lane.b32.xlu0 %v589, 64
    %v591 = vpop.permute.xlu0 %590
    %v592 = vadd.f32 %v578, %v160
    %v593 = vmul.f32 %v591, %v592
    %v594 = vadd.f32 %v294, %v593
    %v595 = vtanh.pop %v594
    %596 = vrot.lane.b32.xlu0 %v589, 96
    %v597 = vpop.permute.xlu0 %596
    %v598 = vsub.f32 %v539, %v595
    %v599 = vmul.f32 %v597, %v598
    %v600 = vadd.f32 %v595, %v599
    %s601 = scalar_lea.vmem [#allocation2], 24
    %602 = vst [vmem:[%s601] sm:$0xff] %v600
    %v603 = vpack.c.bf16 %v600, %v600
    %604 = vmatprep.subr.bf16.mxu0 0
    %605 = vmatpush1.bf16.msra.mxu0 %v345
    %606 = vmatprep.subr.bf16.mxu0 0
    %607 = vmatpush1.bf16.msra.mxu0 %v346
    %608 = vmatprep.subr.bf16.mxu0 0
    %609 = vmatpush1.bf16.msra.mxu0 %v347
    %610 = vmatprep.subr.bf16.mxu0 0
    %611 = vmatpush1.bf16.msra.mxu0 %v348
    %612 = vmatprep.subr.bf16.mxu0 0
    %613 = vmatpush1.bf16.msra.mxu0 %v349
    %614 = vmatprep.subr.bf16.mxu0 0
    %615 = vmatpush1.bf16.msra.mxu0 %v350
    %616 = vmatprep.subr.bf16.mxu0 0
    %617 = vmatpush1.bf16.msra.mxu0 %v351
    %618 = vmatprep.subr.bf16.mxu0 0
    %619 = vmatpush1.bf16.msra.mxu0 %v352
    %620 = vmatprep.subr.bf16.mxu0 0
    %621 = vmatpush1.bf16.msra.mxu0 0
    %622 = vmatprep.subr.bf16.mxu0 0
    %623 = vmatpush1.bf16.msra.mxu0 0
    %624 = vmatprep.subr.bf16.mxu0 0
    %625 = vmatpush1.bf16.msra.mxu0 0
    %626 = vmatprep.subr.bf16.mxu0 0
    %627 = vmatpush1.bf16.msra.mxu0 0
    %628 = vmatprep.subr.bf16.mxu0 0
    %629 = vmatpush1.bf16.msra.mxu0 0
    %630 = vmatprep.subr.bf16.mxu0 0
    %631 = vmatpush1.bf16.msra.mxu0 0
    %632 = vmatprep.subr.bf16.mxu0 0
    %633 = vmatpush1.bf16.msra.mxu0 0
    %634 = vmatprep.subr.bf16.mxu0 0
    %635 = vmatpush1.bf16.msra.mxu0 0
    %636 = vmatprep.mubr.bf16.mxu0 0
    %637 = vmatmul.mubr.bf16.gmra.mrb[0].mxu0 %v603
    %v638 = vpop.f32.mrb[0].mxu0
    %v639 = vadd.f32 0.0, %v638
    %v640 = vpop.f32.mrb[0].mxu0
    %v641 = vpop.f32.mrb[0].mxu0
    %v642 = vpop.f32.mrb[0].mxu0
    %643 = vdwg.mxu0
    %v644 = vadd.f32 %v299, %v639
    %v645 = vxor.u32 %v644, 2147483648
    %v646 = vmul.f32 %v645, 1.442695
    %v647 = vpow.pop %v646
    %v648 = vadd.f32 %v647, 1.0
    %v649 = vrcp.pop %v648
    %v650 = vmul.f32 1.0, %v649
    %651 = vrot.lane.b32.xlu0 %v650, 64
    %v652 = vpop.permute.xlu0 %651
    %v653 = vadd.f32 %v639, %v160
    %v654 = vmul.f32 %v652, %v653
    %v655 = vadd.f32 %v299, %v654
    %v656 = vtanh.pop %v655
    %657 = vrot.lane.b32.xlu0 %v650, 96
    %v658 = vpop.permute.xlu0 %657
    %v659 = vsub.f32 %v600, %v656
    %v660 = vmul.f32 %v658, %v659
    %v661 = vadd.f32 %v656, %v660
    %s662 = scalar_lea.vmem [#allocation2], 32
    %663 = vst [vmem:[%s662] sm:$0xff] %v661
    %v664 = vpack.c.bf16 %v661, %v661
    %665 = vmatprep.subr.bf16.mxu0 0
    %666 = vmatpush1.bf16.msra.mxu0 %v345
    %667 = vmatprep.subr.bf16.mxu0 0
    %668 = vmatpush1.bf16.msra.mxu0 %v346
    %669 = vmatprep.subr.bf16.mxu0 0
    %670 = vmatpush1.bf16.msra.mxu0 %v347
    %671 = vmatprep.subr.bf16.mxu0 0
    %672 = vmatpush1.bf16.msra.mxu0 %v348
    %673 = vmatprep.subr.bf16.mxu0 0
    %674 = vmatpush1.bf16.msra.mxu0 %v349
    %675 = vmatprep.subr.bf16.mxu0 0
    %676 = vmatpush1.bf16.msra.mxu0 %v350
    %677 = vmatprep.subr.bf16.mxu0 0
    %678 = vmatpush1.bf16.msra.mxu0 %v351
    %679 = vmatprep.subr.bf16.mxu0 0
    %680 = vmatpush1.bf16.msra.mxu0 %v352
    %681 = vmatprep.subr.bf16.mxu0 0
    %682 = vmatpush1.bf16.msra.mxu0 0
    %683 = vmatprep.subr.bf16.mxu0 0
    %684 = vmatpush1.bf16.msra.mxu0 0
    %685 = vmatprep.subr.bf16.mxu0 0
    %686 = vmatpush1.bf16.msra.mxu0 0
    %687 = vmatprep.subr.bf16.mxu0 0
    %688 = vmatpush1.bf16.msra.mxu0 0
    %689 = vmatprep.subr.bf16.mxu0 0
    %690 = vmatpush1.bf16.msra.mxu0 0
    %691 = vmatprep.subr.bf16.mxu0 0
    %692 = vmatpush1.bf16.msra.mxu0 0
    %693 = vmatprep.subr.bf16.mxu0 0
    %694 = vmatpush1.bf16.msra.mxu0 0
    %695 = vmatprep.subr.bf16.mxu0 0
    %696 = vmatpush1.bf16.msra.mxu0 0
    %697 = vmatprep.mubr.bf16.mxu0 0
    %698 = vmatmul.mubr.bf16.gmra.mrb[0].mxu0 %v664
    %v699 = vpop.f32.mrb[0].mxu0
    %v700 = vadd.f32 0.0, %v699
    %v701 = vpop.f32.mrb[0].mxu0
    %v702 = vpop.f32.mrb[0].mxu0
    %v703 = vpop.f32.mrb[0].mxu0
    %704 = vdwg.mxu0
    %v705 = vadd.f32 %v302, %v700
    %v706 = vxor.u32 %v705, 2147483648
    %v707 = vmul.f32 %v706, 1.442695
    %v708 = vpow.pop %v707
    %v709 = vadd.f32 %v708, 1.0
    %v710 = vrcp.pop %v709
    %v711 = vmul.f32 1.0, %v710
    %712 = vrot.lane.b32.xlu0 %v711, 64
    %v713 = vpop.permute.xlu0 %712
    %v714 = vadd.f32 %v700, %v160
    %v715 = vmul.f32 %v713, %v714
    %v716 = vadd.f32 %v302, %v715
    %v717 = vtanh.pop %v716
    %718 = vrot.lane.b32.xlu0 %v711, 96
    %v719 = vpop.permute.xlu0 %718
    %v720 = vsub.f32 %v661, %v717
    %v721 = vmul.f32 %v719, %v720
    %v722 = vadd.f32 %v717, %v721
    %s723 = scalar_lea.vmem [#allocation2], 40
    %724 = vst [vmem:[%s723] sm:$0xff] %v722
    %v725 = vpack.c.bf16 %v722, %v722
    %726 = vmatprep.subr.bf16.mxu0 0
    %727 = vmatpush1.bf16.msra.mxu0 %v345
    %728 = vmatprep.subr.bf16.mxu0 0
    %729 = vmatpush1.bf16.msra.mxu0 %v346
    %730 = vmatprep.subr.bf16.mxu0 0
    %731 = vmatpush1.bf16.msra.mxu0 %v347
    %732 = vmatprep.subr.bf16.mxu0 0
    %733 = vmatpush1.bf16.msra.mxu0 %v348
    %734 = vmatprep.subr.bf16.mxu0 0
    %735 = vmatpush1.bf16.msra.mxu0 %v349
    %736 = vmatprep.subr.bf16.mxu0 0
    %737 = vmatpush1.bf16.msra.mxu0 %v350
    %738 = vmatprep.subr.bf16.mxu0 0
    %739 = vmatpush1.bf16.msra.mxu0 %v351
    %740 = vmatprep.subr.bf16.mxu0 0
    %741 = vmatpush1.bf16.msra.mxu0 %v352
    %742 = vmatprep.subr.bf16.mxu0 0
    %743 = vmatpush1.bf16.msra.mxu0 0
    %744 = vmatprep.subr.bf16.mxu0 0
    %745 = vmatpush1.bf16.msra.mxu0 0
    %746 = vmatprep.subr.bf16.mxu0 0
    %747 = vmatpush1.bf16.msra.mxu0 0
    %748 = vmatprep.subr.bf16.mxu0 0
    %749 = vmatpush1.bf16.msra.mxu0 0
    %750 = vmatprep.subr.bf16.mxu0 0
    %751 = vmatpush1.bf16.msra.mxu0 0
    %752 = vmatprep.subr.bf16.mxu0 0
    %753 = vmatpush1.bf16.msra.mxu0 0
    %754 = vmatprep.subr.bf16.mxu0 0
    %755 = vmatpush1.bf16.msra.mxu0 0
    %756 = vmatprep.subr.bf16.mxu0 0
    %757 = vmatpush1.bf16.msra.mxu0 0
    %758 = vmatprep.mubr.bf16.mxu0 0
    %759 = vmatmul.mubr.bf16.gmra.mrb[0].mxu0 %v725
    %v760 = vpop.f32.mrb[0].mxu0
    %v761 = vadd.f32 0.0, %v760
    %v762 = vpop.f32.mrb[0].mxu0
    %v763 = vpop.f32.mrb[0].mxu0
    %v764 = vpop.f32.mrb[0].mxu0
    %765 = vdwg.mxu0
    %v766 = vadd.f32 %v307, %v761
    %v767 = vxor.u32 %v766, 2147483648
    %v768 = vmul.f32 %v767, 1.442695
    %v769 = vpow.pop %v768
    %v770 = vadd.f32 %v769, 1.0
    %v771 = vrcp.pop %v770
    %v772 = vmul.f32 1.0, %v771
    %773 = vrot.lane.b32.xlu0 %v772, 64
    %v774 = vpop.permute.xlu0 %773
    %v775 = vadd.f32 %v761, %v160
    %v776 = vmul.f32 %v774, %v775
    %v777 = vadd.f32 %v307, %v776
    %v778 = vtanh.pop %v777
    %779 = vrot.lane.b32.xlu0 %v772, 96
    %v780 = vpop.permute.xlu0 %779
    %v781 = vsub.f32 %v722, %v778
    %v782 = vmul.f32 %v780, %v781
    %v783 = vadd.f32 %v778, %v782
    %s784 = scalar_lea.vmem [#allocation2], 48
    %785 = vst [vmem:[%s784] sm:$0xff] %v783
    %v786 = vpack.c.bf16 %v783, %v783
    %787 = vmatprep.subr.bf16.mxu0 0
    %788 = vmatpush1.bf16.msra.mxu0 %v345
    %789 = vmatprep.subr.bf16.mxu0 0
    %790 = vmatpush1.bf16.msra.mxu0 %v346
    %791 = vmatprep.subr.bf16.mxu0 0
    %792 = vmatpush1.bf16.msra.mxu0 %v347
    %793 = vmatprep.subr.bf16.mxu0 0
    %794 = vmatpush1.bf16.msra.mxu0 %v348
    %795 = vmatprep.subr.bf16.mxu0 0
    %796 = vmatpush1.bf16.msra.mxu0 %v349
    %797 = vmatprep.subr.bf16.mxu0 0
    %798 = vmatpush1.bf16.msra.mxu0 %v350
    %799 = vmatprep.subr.bf16.mxu0 0
    %800 = vmatpush1.bf16.msra.mxu0 %v351
    %801 = vmatprep.subr.bf16.mxu0 0
    %802 = vmatpush1.bf16.msra.mxu0 %v352
    %803 = vmatprep.subr.bf16.mxu0 0
    %804 = vmatpush1.bf16.msra.mxu0 0
    %805 = vmatprep.subr.bf16.mxu0 0
    %806 = vmatpush1.bf16.msra.mxu0 0
    %807 = vmatprep.subr.bf16.mxu0 0
    %808 = vmatpush1.bf16.msra.mxu0 0
    %809 = vmatprep.subr.bf16.mxu0 0
    %810 = vmatpush1.bf16.msra.mxu0 0
    %811 = vmatprep.subr.bf16.mxu0 0
    %812 = vmatpush1.bf16.msra.mxu0 0
    %813 = vmatprep.subr.bf16.mxu0 0
    %814 = vmatpush1.bf16.msra.mxu0 0
    %815 = vmatprep.subr.bf16.mxu0 0
    %816 = vmatpush1.bf16.msra.mxu0 0
    %817 = vmatprep.subr.bf16.mxu0 0
    %818 = vmatpush1.bf16.msra.mxu0 0
    %819 = vmatprep.mubr.bf16.mxu0 0
    %820 = vmatmul.mubr.bf16.gmra.mrb[0].mxu0 %v786
    %v821 = vpop.f32.mrb[0].mxu0
    %v822 = vadd.f32 0.0, %v821
    %v823 = vpop.f32.mrb[0].mxu0
    %v824 = vpop.f32.mrb[0].mxu0
    %v825 = vpop.f32.mrb[0].mxu0
    %826 = vdwg.mxu0
    %v827 = vadd.f32 %v310, %v822
    %v828 = vxor.u32 %v827, 2147483648
    %v829 = vmul.f32 %v828, 1.442695
    %v830 = vpow.pop %v829
    %v831 = vadd.f32 %v830, 1.0
    %v832 = vrcp.pop %v831
    %v833 = vmul.f32 1.0, %v832
    %834 = vrot.lane.b32.xlu0 %v833, 64
    %v835 = vpop.permute.xlu0 %834
    %v836 = vadd.f32 %v822, %v160
    %v837 = vmul.f32 %v835, %v836
    %v838 = vadd.f32 %v310, %v837
    %v839 = vtanh.pop %v838
    %840 = vrot.lane.b32.xlu0 %v833, 96
    %v841 = vpop.permute.xlu0 %840
    %v842 = vsub.f32 %v783, %v839
    %v843 = vmul.f32 %v841, %v842
    %v844 = vadd.f32 %v839, %v843
    %s845 = scalar_lea.vmem [#allocation2], 56
    %846 = vst [vmem:[%s845] sm:$0xff] %v844
    %v847 = vld [vmem:[#allocation9] sm:$0xf]
    %v848 = vld [vmem:[#allocation9 + $0x4] sm:$0xf]
    %v849 = vld [vmem:[#allocation9 + $0x8] sm:$0xf]
    %v850 = vld [vmem:[#allocation9 + $0xc] sm:$0xf]
    %v851 = vld [vmem:[#allocation9 + $0x10] sm:$0xf]
    %v852 = vld [vmem:[#allocation9 + $0x14] sm:$0xf]
    %v853 = vld [vmem:[#allocation9 + $0x18] sm:$0xf]
    %v854 = vld [vmem:[#allocation9 + $0x1c] sm:$0xf]
    %v855 = vld [vmem:[#allocation9 + $0x20] sm:$0xf]
    %v856 = vld [vmem:[#allocation9 + $0x24] sm:$0xf]
    %v857 = vld [vmem:[#allocation9 + $0x28] sm:$0xf]
    %v858 = vld [vmem:[#allocation9 + $0x2c] sm:$0xf]
    %v859 = vld [vmem:[#allocation9 + $0x30] sm:$0xf]
    %v860 = vld [vmem:[#allocation9 + $0x34] sm:$0xf]
    %v861 = vld [vmem:[#allocation9 + $0x38] sm:$0xf]
    %v862 = vld [vmem:[#allocation9 + $0x3c] sm:$0xf]
    %v863 = vld [vmem:[#allocation11] sm:$0xf]
    %v864 = vld [vmem:[#allocation11 + $0x4] sm:$0xf]
    %v865 = vld [vmem:[#allocation11 + $0x8] sm:$0xf]
    %v866 = vld [vmem:[#allocation11 + $0xc] sm:$0xf]
    %v867 = vld [vmem:[#allocation11 + $0x10] sm:$0xf]
    %v868 = vld [vmem:[#allocation11 + $0x14] sm:$0xf]
    %v869 = vld [vmem:[#allocation11 + $0x18] sm:$0xf]
    %v870 = vld [vmem:[#allocation11 + $0x1c] sm:$0xf]
    %v871 = vld [vmem:[#allocation11 + $0x20] sm:$0xf]
    %v872 = vld [vmem:[#allocation11 + $0x24] sm:$0xf]
    %v873 = vld [vmem:[#allocation11 + $0x28] sm:$0xf]
    %v874 = vld [vmem:[#allocation11 + $0x2c] sm:$0xf]
    %v875 = vld [vmem:[#allocation11 + $0x30] sm:$0xf]
    %v876 = vld [vmem:[#allocation11 + $0x34] sm:$0xf]
    %v877 = vld [vmem:[#allocation11 + $0x38] sm:$0xf]
    %v878 = vld [vmem:[#allocation11 + $0x3c] sm:$0xf]
    %v879 = vld [vmem:[%s7] sm:$0x1]
    %v880 = vld [vmem:[%s8] sm:$0x1]
    %v882 = vlaneseq
    %v883 = vshrl.u32 %v882, 7
    %v884 = vsub.s32 0, %v883
    %v885 = vrot.slane %v880, %v884
    %v887 = vld [vmem:[#allocation2] sm:$0xff]
    %v888 = vld [vmem:[#allocation2 + $0x8] sm:$0xff]
    %v889 = vld [vmem:[#allocation2 + $0x10] sm:$0xff]
    %v890 = vld [vmem:[#allocation2 + $0x18] sm:$0xff]
    %v891 = vld [vmem:[#allocation2 + $0x20] sm:$0xff]
    %v892 = vld [vmem:[#allocation2 + $0x28] sm:$0xff]
    %v893 = vld [vmem:[#allocation2 + $0x30] sm:$0xff]
    %v894 = vld [vmem:[#allocation2 + $0x38] sm:$0xff]
    %v895 = vpack.c.bf16 %v887, %v887
    %v896 = vpack.c.bf16 %v888, %v888
    %v897 = vpack.c.bf16 %v889, %v889
    %v898 = vpack.c.bf16 %v890, %v890
    %v899 = vpack.c.bf16 %v891, %v891
    %v900 = vpack.c.bf16 %v892, %v892
    %v901 = vpack.c.bf16 %v893, %v893
    %v902 = vpack.c.bf16 %v894, %v894
    %v904 = vlaneseq
    %v905 = vshrl.u32 %v904, 7
    %v906 = vsub.s32 0, %v905
    %v907 = vrot.slane %v879, %v906
    %v917 = vunpack.c.l.b16 %v895
    %v918 = vunpack.c.l.b16 %v896
    %v919 = vunpack.c.l.b16 %v897
    %v920 = vunpack.c.l.b16 %v898
    %v921 = vunpack.c.l.b16 %v899
    %v922 = vunpack.c.l.b16 %v900
    %v923 = vunpack.c.l.b16 %v901
    %v924 = vunpack.c.l.b16 %v902
    %v925 = vpack.c.b16 %v918, %v917
    %v926 = vpack.c.b16 %v920, %v919
    %v927 = vpack.c.b16 %v922, %v921
    %v928 = vpack.c.b16 %v924, %v923
    %v949 = vunpack.c.l.b16 %v847
    %v950 = vunpack.c.l.b16 %v848
    %v951 = vunpack.c.l.b16 %v849
    %v952 = vunpack.c.l.b16 %v850
    %v953 = vunpack.c.l.b16 %v851
    %v954 = vunpack.c.l.b16 %v852
    %v955 = vunpack.c.l.b16 %v853
    %v956 = vunpack.c.l.b16 %v854
    %v957 = vunpack.c.l.b16 %v855
    %v958 = vunpack.c.l.b16 %v856
    %v959 = vunpack.c.l.b16 %v857
    %v960 = vunpack.c.l.b16 %v858
    %v961 = vunpack.c.l.b16 %v859
    %v962 = vunpack.c.l.b16 %v860
    %v963 = vunpack.c.l.b16 %v861
    %v964 = vunpack.c.l.b16 %v862
    %v965 = vpack.c.b16 %v950, %v949
    %v966 = vpack.c.b16 %v952, %v951
    %v967 = vpack.c.b16 %v954, %v953
    %v968 = vpack.c.b16 %v956, %v955
    %v969 = vpack.c.b16 %v958, %v957
    %v970 = vpack.c.b16 %v960, %v959
    %v971 = vpack.c.b16 %v962, %v961
    %v972 = vpack.c.b16 %v964, %v963
    %981 = vmatprep.subr.bf16.mxu0 0
    %982 = vmatpush1.bf16.msra.mxu0 %v965
    %983 = vmatprep.subr.bf16.mxu0 0
    %984 = vmatpush1.bf16.msra.mxu0 %v966
    %985 = vmatprep.subr.bf16.mxu0 0
    %986 = vmatpush1.bf16.msra.mxu0 %v967
    %987 = vmatprep.subr.bf16.mxu0 0
    %988 = vmatpush1.bf16.msra.mxu0 %v968
    %989 = vmatprep.subr.bf16.mxu0 0
    %990 = vmatpush1.bf16.msra.mxu0 %v969
    %991 = vmatprep.subr.bf16.mxu0 0
    %992 = vmatpush1.bf16.msra.mxu0 %v970
    %993 = vmatprep.subr.bf16.mxu0 0
    %994 = vmatpush1.bf16.msra.mxu0 %v971
    %995 = vmatprep.subr.bf16.mxu0 0
    %996 = vmatpush1.bf16.msra.mxu0 %v972
    %997 = vmatprep.subr.bf16.mxu0 0
    %998 = vmatpush1.bf16.msra.mxu0 0
    %999 = vmatprep.subr.bf16.mxu0 0
    %1000 = vmatpush1.bf16.msra.mxu0 0
    %1001 = vmatprep.subr.bf16.mxu0 0
    %1002 = vmatpush1.bf16.msra.mxu0 0
    %1003 = vmatprep.subr.bf16.mxu0 0
    %1004 = vmatpush1.bf16.msra.mxu0 0
    %1005 = vmatprep.subr.bf16.mxu0 0
    %1006 = vmatpush1.bf16.msra.mxu0 0
    %1007 = vmatprep.subr.bf16.mxu0 0
    %1008 = vmatpush1.bf16.msra.mxu0 0
    %1009 = vmatprep.subr.bf16.mxu0 0
    %1010 = vmatpush1.bf16.msra.mxu0 0
    %1011 = vmatprep.subr.bf16.mxu0 0
    %1012 = vmatpush1.bf16.msra.mxu0 0
    %1013 = vmatprep.mubr.bf16.mxu0 0
    %1014 = vmatmul.mubr.bf16.gmra.mrb[0].mxu0 %v925
    %v1015 = vpop.f32.mrb[0].mxu0
    %v1016 = vadd.f32 %v907, %v1015
    %v1017 = vpop.f32.mrb[0].mxu0
    %v1018 = vpop.f32.mrb[0].mxu0
    %v1019 = vadd.f32 %v907, %v1018
    %v1020 = vpop.f32.mrb[0].mxu0
    %1021 = vmatprep.mubr.bf16.mxu0 0
    %1022 = vmatmul.mubr.bf16.gmra.mrb[0].mxu0 %v926
    %v1023 = vpop.f32.mrb[0].mxu0
    %v1024 = vadd.f32 %v907, %v1023
    %v1025 = vpop.f32.mrb[0].mxu0
    %v1026 = vpop.f32.mrb[0].mxu0
    %v1027 = vadd.f32 %v907, %v1026
    %v1028 = vpop.f32.mrb[0].mxu0
    %1029 = vmatprep.mubr.bf16.mxu0 0
    %1030 = vmatmul.mubr.bf16.gmra.mrb[0].mxu0 %v927
    %v1031 = vpop.f32.mrb[0].mxu0
    %v1032 = vadd.f32 %v907, %v1031
    %v1033 = vpop.f32.mrb[0].mxu0
    %v1034 = vpop.f32.mrb[0].mxu0
    %v1035 = vadd.f32 %v907, %v1034
    %v1036 = vpop.f32.mrb[0].mxu0
    %1037 = vmatprep.mubr.bf16.mxu0 0
    %1038 = vmatmul.mubr.bf16.gmra.mrb[0].mxu0 %v928
    %v1039 = vpop.f32.mrb[0].mxu0
    %v1040 = vadd.f32 %v907, %v1039
    %v1041 = vpop.f32.mrb[0].mxu0
    %v1042 = vpop.f32.mrb[0].mxu0
    %v1043 = vadd.f32 %v907, %v1042
    %v1044 = vpop.f32.mrb[0].mxu0
    %1045 = vdwg.mxu0
    %v1062 = vunpack.c.l.b16 %v863
    %v1063 = vunpack.c.l.b16 %v864
    %v1064 = vunpack.c.l.b16 %v865
    %v1065 = vunpack.c.l.b16 %v866
    %v1066 = vunpack.c.l.b16 %v867
    %v1067 = vunpack.c.l.b16 %v868
    %v1068 = vunpack.c.l.b16 %v869
    %v1069 = vunpack.c.l.b16 %v870
    %v1070 = vunpack.c.l.b16 %v871
    %v1071 = vunpack.c.l.b16 %v872
    %v1072 = vunpack.c.l.b16 %v873
    %v1073 = vunpack.c.l.b16 %v874
    %v1074 = vunpack.c.l.b16 %v875
    %v1075 = vunpack.c.l.b16 %v876
    %v1076 = vunpack.c.l.b16 %v877
    %v1077 = vunpack.c.l.b16 %v878
    %v1078 = vpack.c.b16 %v1063, %v1062
    %v1079 = vpack.c.b16 %v1065, %v1064
    %v1080 = vpack.c.b16 %v1067, %v1066
    %v1081 = vpack.c.b16 %v1069, %v1068
    %v1082 = vpack.c.b16 %v1071, %v1070
    %v1083 = vpack.c.b16 %v1073, %v1072
    %v1084 = vpack.c.b16 %v1075, %v1074
    %v1085 = vpack.c.b16 %v1077, %v1076
    %1094 = vmatprep.subr.bf16.mxu0 0
    %1095 = vmatpush1.bf16.msra.mxu0 %v1078
    %1096 = vmatprep.subr.bf16.mxu0 0
    %1097 = vmatpush1.bf16.msra.mxu0 %v1079
    %1098 = vmatprep.subr.bf16.mxu0 0
    %1099 = vmatpush1.bf16.msra.mxu0 %v1080
    %1100 = vmatprep.subr.bf16.mxu0 0
    %1101 = vmatpush1.bf16.msra.mxu0 %v1081
    %1102 = vmatprep.subr.bf16.mxu0 0
    %1103 = vmatpush1.bf16.msra.mxu0 %v1082
    %1104 = vmatprep.subr.bf16.mxu0 0
    %1105 = vmatpush1.bf16.msra.mxu0 %v1083
    %1106 = vmatprep.subr.bf16.mxu0 0
    %1107 = vmatpush1.bf16.msra.mxu0 %v1084
    %1108 = vmatprep.subr.bf16.mxu0 0
    %1109 = vmatpush1.bf16.msra.mxu0 %v1085
    %1110 = vmatprep.subr.bf16.mxu0 0
    %1111 = vmatpush1.bf16.msra.mxu0 0
    %1112 = vmatprep.subr.bf16.mxu0 0
    %1113 = vmatpush1.bf16.msra.mxu0 0
    %1114 = vmatprep.subr.bf16.mxu0 0
    %1115 = vmatpush1.bf16.msra.mxu0 0
    %1116 = vmatprep.subr.bf16.mxu0 0
    %1117 = vmatpush1.bf16.msra.mxu0 0
    %1118 = vmatprep.subr.bf16.mxu0 0
    %1119 = vmatpush1.bf16.msra.mxu0 0
    %1120 = vmatprep.subr.bf16.mxu0 0
    %1121 = vmatpush1.bf16.msra.mxu0 0
    %1122 = vmatprep.subr.bf16.mxu0 0
    %1123 = vmatpush1.bf16.msra.mxu0 0
    %1124 = vmatprep.subr.bf16.mxu0 0
    %1125 = vmatpush1.bf16.msra.mxu0 0
    %1126 = vmatprep.mubr.bf16.mxu0 0
    %1127 = vmatmul.mubr.bf16.gmra.mrb[0].mxu0 0
    %v1128 = vpop.f32.mrb[0].mxu0
    %v1129 = vadd.f32 0.0, %v1128
    %v1130 = vpop.f32.mrb[0].mxu0
    %v1131 = vpop.f32.mrb[0].mxu0
    %v1132 = vpop.f32.mrb[0].mxu0
    %1133 = vdwg.mxu0
    %v1134 = vadd.f32 %v1016, %v1129
    %v1135 = vxor.u32 %v1134, 2147483648
    %v1136 = vmul.f32 %v1135, 1.442695
    %v1137 = vpow.pop %v1136
    %v1138 = vadd.f32 %v1137, 1.0
    %v1139 = vrcp.pop %v1138
    %v1140 = vmul.f32 1.0, %v1139
    %1141 = vrot.lane.b32.xlu0 %v1140, 64
    %v1142 = vpop.permute.xlu0 %1141
    %v1143 = vadd.f32 %v1129, %v885
    %v1144 = vmul.f32 %v1142, %v1143
    %v1145 = vadd.f32 %v1016, %v1144
    %v1146 = vtanh.pop %v1145
    %1147 = vrot.lane.b32.xlu0 %v1140, 96
    %v1148 = vpop.permute.xlu0 %1147
    %v1149 = vsub.f32 0.0, %v1146
    %v1150 = vmul.f32 %v1148, %v1149
    %v1151 = vadd.f32 %v1146, %v1150
    %v1152 = vpack.c.bf16 %v1151, %v1151
    %1153 = vmatprep.subr.bf16.mxu0 0
    %1154 = vmatpush1.bf16.msra.mxu0 %v1078
    %1155 = vmatprep.subr.bf16.mxu0 0
    %1156 = vmatpush1.bf16.msra.mxu0 %v1079
    %1157 = vmatprep.subr.bf16.mxu0 0
    %1158 = vmatpush1.bf16.msra.mxu0 %v1080
    %1159 = vmatprep.subr.bf16.mxu0 0
    %1160 = vmatpush1.bf16.msra.mxu0 %v1081
    %1161 = vmatprep.subr.bf16.mxu0 0
    %1162 = vmatpush1.bf16.msra.mxu0 %v1082
    %1163 = vmatprep.subr.bf16.mxu0 0
    %1164 = vmatpush1.bf16.msra.mxu0 %v1083
    %1165 = vmatprep.subr.bf16.mxu0 0
    %1166 = vmatpush1.bf16.msra.mxu0 %v1084
    %1167 = vmatprep.subr.bf16.mxu0 0
    %1168 = vmatpush1.bf16.msra.mxu0 %v1085
    %1169 = vmatprep.subr.bf16.mxu0 0
    %1170 = vmatpush1.bf16.msra.mxu0 0
    %1171 = vmatprep.subr.bf16.mxu0 0
    %1172 = vmatpush1.bf16.msra.mxu0 0
    %1173 = vmatprep.subr.bf16.mxu0 0
    %1174 = vmatpush1.bf16.msra.mxu0 0
    %1175 = vmatprep.subr.bf16.mxu0 0
    %1176 = vmatpush1.bf16.msra.mxu0 0
    %1177 = vmatprep.subr.bf16.mxu0 0
    %1178 = vmatpush1.bf16.msra.mxu0 0
    %1179 = vmatprep.subr.bf16.mxu0 0
    %1180 = vmatpush1.bf16.msra.mxu0 0
    %1181 = vmatprep.subr.bf16.mxu0 0
    %1182 = vmatpush1.bf16.msra.mxu0 0
    %1183 = vmatprep.subr.bf16.mxu0 0
    %1184 = vmatpush1.bf16.msra.mxu0 0
    %1185 = vmatprep.mubr.bf16.mxu0 0
    %1186 = vmatmul.mubr.bf16.gmra.mrb[0].mxu0 %v1152
    %v1187 = vpop.f32.mrb[0].mxu0
    %v1188 = vadd.f32 0.0, %v1187
    %v1189 = vpop.f32.mrb[0].mxu0
    %v1190 = vpop.f32.mrb[0].mxu0
    %v1191 = vpop.f32.mrb[0].mxu0
    %1192 = vdwg.mxu0
    %v1193 = vadd.f32 %v1019, %v1188
    %v1194 = vxor.u32 %v1193, 2147483648
    %v1195 = vmul.f32 %v1194, 1.442695
    %v1196 = vpow.pop %v1195
    %v1197 = vadd.f32 %v1196, 1.0
    %v1198 = vrcp.pop %v1197
    %v1199 = vmul.f32 1.0, %v1198
    %1200 = vrot.lane.b32.xlu0 %v1199, 64
    %v1201 = vpop.permute.xlu0 %1200
    %v1202 = vadd.f32 %v1188, %v885
    %v1203 = vmul.f32 %v1201, %v1202
    %v1204 = vadd.f32 %v1019, %v1203
    %v1205 = vtanh.pop %v1204
    %1206 = vrot.lane.b32.xlu0 %v1199, 96
    %v1207 = vpop.permute.xlu0 %1206
    %v1208 = vsub.f32 %v1151, %v1205
    %v1209 = vmul.f32 %v1207, %v1208
    %v1210 = vadd.f32 %v1205, %v1209
    %v1211 = vpack.c.bf16 %v1210, %v1210
    %1212 = vmatprep.subr.bf16.mxu0 0
    %1213 = vmatpush1.bf16.msra.mxu0 %v1078
    %1214 = vmatprep.subr.bf16.mxu0 0
    %1215 = vmatpush1.bf16.msra.mxu0 %v1079
    %1216 = vmatprep.subr.bf16.mxu0 0
    %1217 = vmatpush1.bf16.msra.mxu0 %v1080
    %1218 = vmatprep.subr.bf16.mxu0 0
    %1219 = vmatpush1.bf16.msra.mxu0 %v1081
    %1220 = vmatprep.subr.bf16.mxu0 0
    %1221 = vmatpush1.bf16.msra.mxu0 %v1082
    %1222 = vmatprep.subr.bf16.mxu0 0
    %1223 = vmatpush1.bf16.msra.mxu0 %v1083
    %1224 = vmatprep.subr.bf16.mxu0 0
    %1225 = vmatpush1.bf16.msra.mxu0 %v1084
    %1226 = vmatprep.subr.bf16.mxu0 0
    %1227 = vmatpush1.bf16.msra.mxu0 %v1085
    %1228 = vmatprep.subr.bf16.mxu0 0
    %1229 = vmatpush1.bf16.msra.mxu0 0
    %1230 = vmatprep.subr.bf16.mxu0 0
    %1231 = vmatpush1.bf16.msra.mxu0 0
    %1232 = vmatprep.subr.bf16.mxu0 0
    %1233 = vmatpush1.bf16.msra.mxu0 0
    %1234 = vmatprep.subr.bf16.mxu0 0
    %1235 = vmatpush1.bf16.msra.mxu0 0
    %1236 = vmatprep.subr.bf16.mxu0 0
    %1237 = vmatpush1.bf16.msra.mxu0 0
    %1238 = vmatprep.subr.bf16.mxu0 0
    %1239 = vmatpush1.bf16.msra.mxu0 0
    %1240 = vmatprep.subr.bf16.mxu0 0
    %1241 = vmatpush1.bf16.msra.mxu0 0
    %1242 = vmatprep.subr.bf16.mxu0 0
    %1243 = vmatpush1.bf16.msra.mxu0 0
    %1244 = vmatprep.mubr.bf16.mxu0 0
    %1245 = vmatmul.mubr.bf16.gmra.mrb[0].mxu0 %v1211
    %v1246 = vpop.f32.mrb[0].mxu0
    %v1247 = vadd.f32 0.0, %v1246
    %v1248 = vpop.f32.mrb[0].mxu0
    %v1249 = vpop.f32.mrb[0].mxu0
    %v1250 = vpop.f32.mrb[0].mxu0
    %1251 = vdwg.mxu0
    %v1252 = vadd.f32 %v1024, %v1247
    %v1253 = vxor.u32 %v1252, 2147483648
    %v1254 = vmul.f32 %v1253, 1.442695
    %v1255 = vpow.pop %v1254
    %v1256 = vadd.f32 %v1255, 1.0
    %v1257 = vrcp.pop %v1256
    %v1258 = vmul.f32 1.0, %v1257
    %1259 = vrot.lane.b32.xlu0 %v1258, 64
    %v1260 = vpop.permute.xlu0 %1259
    %v1261 = vadd.f32 %v1247, %v885
    %v1262 = vmul.f32 %v1260, %v1261
    %v1263 = vadd.f32 %v1024, %v1262
    %v1264 = vtanh.pop %v1263
    %1265 = vrot.lane.b32.xlu0 %v1258, 96
    %v1266 = vpop.permute.xlu0 %1265
    %v1267 = vsub.f32 %v1210, %v1264
    %v1268 = vmul.f32 %v1266, %v1267
    %v1269 = vadd.f32 %v1264, %v1268
    %v1270 = vpack.c.bf16 %v1269, %v1269
    %1271 = vmatprep.subr.bf16.mxu0 0
    %1272 = vmatpush1.bf16.msra.mxu0 %v1078
    %1273 = vmatprep.subr.bf16.mxu0 0
    %1274 = vmatpush1.bf16.msra.mxu0 %v1079
    %1275 = vmatprep.subr.bf16.mxu0 0
    %1276 = vmatpush1.bf16.msra.mxu0 %v1080
    %1277 = vmatprep.subr.bf16.mxu0 0
    %1278 = vmatpush1.bf16.msra.mxu0 %v1081
    %1279 = vmatprep.subr.bf16.mxu0 0
    %1280 = vmatpush1.bf16.msra.mxu0 %v1082
    %1281 = vmatprep.subr.bf16.mxu0 0
    %1282 = vmatpush1.bf16.msra.mxu0 %v1083
    %1283 = vmatprep.subr.bf16.mxu0 0
    %1284 = vmatpush1.bf16.msra.mxu0 %v1084
    %1285 = vmatprep.subr.bf16.mxu0 0
    %1286 = vmatpush1.bf16.msra.mxu0 %v1085
    %1287 = vmatprep.subr.bf16.mxu0 0
    %1288 = vmatpush1.bf16.msra.mxu0 0
    %1289 = vmatprep.subr.bf16.mxu0 0
    %1290 = vmatpush1.bf16.msra.mxu0 0
    %1291 = vmatprep.subr.bf16.mxu0 0
    %1292 = vmatpush1.bf16.msra.mxu0 0
    %1293 = vmatprep.subr.bf16.mxu0 0
    %1294 = vmatpush1.bf16.msra.mxu0 0
    %1295 = vmatprep.subr.bf16.mxu0 0
    %1296 = vmatpush1.bf16.msra.mxu0 0
    %1297 = vmatprep.subr.bf16.mxu0 0
    %1298 = vmatpush1.bf16.msra.mxu0 0
    %1299 = vmatprep.subr.bf16.mxu0 0
    %1300 = vmatpush1.bf16.msra.mxu0 0
    %1301 = vmatprep.subr.bf16.mxu0 0
    %1302 = vmatpush1.bf16.msra.mxu0 0
    %1303 = vmatprep.mubr.bf16.mxu0 0
    %1304 = vmatmul.mubr.bf16.gmra.mrb[0].mxu0 %v1270
    %v1305 = vpop.f32.mrb[0].mxu0
    %v1306 = vadd.f32 0.0, %v1305
    %v1307 = vpop.f32.mrb[0].mxu0
    %v1308 = vpop.f32.mrb[0].mxu0
    %v1309 = vpop.f32.mrb[0].mxu0
    %1310 = vdwg.mxu0
    %v1311 = vadd.f32 %v1027, %v1306
    %v1312 = vxor.u32 %v1311, 2147483648
    %v1313 = vmul.f32 %v1312, 1.442695
    %v1314 = vpow.pop %v1313
    %v1315 = vadd.f32 %v1314, 1.0
    %v1316 = vrcp.pop %v1315
    %v1317 = vmul.f32 1.0, %v1316
    %1318 = vrot.lane.b32.xlu0 %v1317, 64
    %v1319 = vpop.permute.xlu0 %1318
    %v1320 = vadd.f32 %v1306, %v885
    %v1321 = vmul.f32 %v1319, %v1320
    %v1322 = vadd.f32 %v1027, %v1321
    %v1323 = vtanh.pop %v1322
    %1324 = vrot.lane.b32.xlu0 %v1317, 96
    %v1325 = vpop.permute.xlu0 %1324
    %v1326 = vsub.f32 %v1269, %v1323
    %v1327 = vmul.f32 %v1325, %v1326
    %v1328 = vadd.f32 %v1323, %v1327
    %v1329 = vpack.c.bf16 %v1328, %v1328
    %1330 = vmatprep.subr.bf16.mxu0 0
    %1331 = vmatpush1.bf16.msra.mxu0 %v1078
    %1332 = vmatprep.subr.bf16.mxu0 0
    %1333 = vmatpush1.bf16.msra.mxu0 %v1079
    %1334 = vmatprep.subr.bf16.mxu0 0
    %1335 = vmatpush1.bf16.msra.mxu0 %v1080
    %1336 = vmatprep.subr.bf16.mxu0 0
    %1337 = vmatpush1.bf16.msra.mxu0 %v1081
    %1338 = vmatprep.subr.bf16.mxu0 0
    %1339 = vmatpush1.bf16.msra.mxu0 %v1082
    %1340 = vmatprep.subr.bf16.mxu0 0
    %1341 = vmatpush1.bf16.msra.mxu0 %v1083
    %1342 = vmatprep.subr.bf16.mxu0 0
    %1343 = vmatpush1.bf16.msra.mxu0 %v1084
    %1344 = vmatprep.subr.bf16.mxu0 0
    %1345 = vmatpush1.bf16.msra.mxu0 %v1085
    %1346 = vmatprep.subr.bf16.mxu0 0
    %1347 = vmatpush1.bf16.msra.mxu0 0
    %1348 = vmatprep.subr.bf16.mxu0 0
    %1349 = vmatpush1.bf16.msra.mxu0 0
    %1350 = vmatprep.subr.bf16.mxu0 0
    %1351 = vmatpush1.bf16.msra.mxu0 0
    %1352 = vmatprep.subr.bf16.mxu0 0
    %1353 = vmatpush1.bf16.msra.mxu0 0
    %1354 = vmatprep.subr.bf16.mxu0 0
    %1355 = vmatpush1.bf16.msra.mxu0 0
    %1356 = vmatprep.subr.bf16.mxu0 0
    %1357 = vmatpush1.bf16.msra.mxu0 0
    %1358 = vmatprep.subr.bf16.mxu0 0
    %1359 = vmatpush1.bf16.msra.mxu0 0
    %1360 = vmatprep.subr.bf16.mxu0 0
    %1361 = vmatpush1.bf16.msra.mxu0 0
    %1362 = vmatprep.mubr.bf16.mxu0 0
    %1363 = vmatmul.mubr.bf16.gmra.mrb[0].mxu0 %v1329
    %v1364 = vpop.f32.mrb[0].mxu0
    %v1365 = vadd.f32 0.0, %v1364
    %v1366 = vpop.f32.mrb[0].mxu0
    %v1367 = vpop.f32.mrb[0].mxu0
    %v1368 = vpop.f32.mrb[0].mxu0
    %1369 = vdwg.mxu0
    %v1370 = vadd.f32 %v1032, %v1365
    %v1371 = vxor.u32 %v1370, 2147483648
    %v1372 = vmul.f32 %v1371, 1.442695
    %v1373 = vpow.pop %v1372
    %v1374 = vadd.f32 %v1373, 1.0
    %v1375 = vrcp.pop %v1374
    %v1376 = vmul.f32 1.0, %v1375
    %1377 = vrot.lane.b32.xlu0 %v1376, 64
    %v1378 = vpop.permute.xlu0 %1377
    %v1379 = vadd.f32 %v1365, %v885
    %v1380 = vmul.f32 %v1378, %v1379
    %v1381 = vadd.f32 %v1032, %v1380
    %v1382 = vtanh.pop %v1381
    %1383 = vrot.lane.b32.xlu0 %v1376, 96
    %v1384 = vpop.permute.xlu0 %1383
    %v1385 = vsub.f32 %v1328, %v1382
    %v1386 = vmul.f32 %v1384, %v1385
    %v1387 = vadd.f32 %v1382, %v1386
    %v1388 = vpack.c.bf16 %v1387, %v1387
    %1389 = vmatprep.subr.bf16.mxu0 0
    %1390 = vmatpush1.bf16.msra.mxu0 %v1078
    %1391 = vmatprep.subr.bf16.mxu0 0
    %1392 = vmatpush1.bf16.msra.mxu0 %v1079
    %1393 = vmatprep.subr.bf16.mxu0 0
    %1394 = vmatpush1.bf16.msra.mxu0 %v1080
    %1395 = vmatprep.subr.bf16.mxu0 0
    %1396 = vmatpush1.bf16.msra.mxu0 %v1081
    %1397 = vmatprep.subr.bf16.mxu0 0
    %1398 = vmatpush1.bf16.msra.mxu0 %v1082
    %1399 = vmatprep.subr.bf16.mxu0 0
    %1400 = vmatpush1.bf16.msra.mxu0 %v1083
    %1401 = vmatprep.subr.bf16.mxu0 0
    %1402 = vmatpush1.bf16.msra.mxu0 %v1084
    %1403 = vmatprep.subr.bf16.mxu0 0
    %1404 = vmatpush1.bf16.msra.mxu0 %v1085
    %1405 = vmatprep.subr.bf16.mxu0 0
    %1406 = vmatpush1.bf16.msra.mxu0 0
    %1407 = vmatprep.subr.bf16.mxu0 0
    %1408 = vmatpush1.bf16.msra.mxu0 0
    %1409 = vmatprep.subr.bf16.mxu0 0
    %1410 = vmatpush1.bf16.msra.mxu0 0
    %1411 = vmatprep.subr.bf16.mxu0 0
    %1412 = vmatpush1.bf16.msra.mxu0 0
    %1413 = vmatprep.subr.bf16.mxu0 0
    %1414 = vmatpush1.bf16.msra.mxu0 0
    %1415 = vmatprep.subr.bf16.mxu0 0
    %1416 = vmatpush1.bf16.msra.mxu0 0
    %1417 = vmatprep.subr.bf16.mxu0 0
    %1418 = vmatpush1.bf16.msra.mxu0 0
    %1419 = vmatprep.subr.bf16.mxu0 0
    %1420 = vmatpush1.bf16.msra.mxu0 0
    %1421 = vmatprep.mubr.bf16.mxu0 0
    %1422 = vmatmul.mubr.bf16.gmra.mrb[0].mxu0 %v1388
    %v1423 = vpop.f32.mrb[0].mxu0
    %v1424 = vadd.f32 0.0, %v1423
    %v1425 = vpop.f32.mrb[0].mxu0
    %v1426 = vpop.f32.mrb[0].mxu0
    %v1427 = vpop.f32.mrb[0].mxu0
    %1428 = vdwg.mxu0
    %v1429 = vadd.f32 %v1035, %v1424
    %v1430 = vxor.u32 %v1429, 2147483648
    %v1431 = vmul.f32 %v1430, 1.442695
    %v1432 = vpow.pop %v1431
    %v1433 = vadd.f32 %v1432, 1.0
    %v1434 = vrcp.pop %v1433
    %v1435 = vmul.f32 1.0, %v1434
    %1436 = vrot.lane.b32.xlu0 %v1435, 64
    %v1437 = vpop.permute.xlu0 %1436
    %v1438 = vadd.f32 %v1424, %v885
    %v1439 = vmul.f32 %v1437, %v1438
    %v1440 = vadd.f32 %v1035, %v1439
    %v1441 = vtanh.pop %v1440
    %1442 = vrot.lane.b32.xlu0 %v1435, 96
    %v1443 = vpop.permute.xlu0 %1442
    %v1444 = vsub.f32 %v1387, %v1441
    %v1445 = vmul.f32 %v1443, %v1444
    %v1446 = vadd.f32 %v1441, %v1445
    %v1447 = vpack.c.bf16 %v1446, %v1446
    %1448 = vmatprep.subr.bf16.mxu0 0
    %1449 = vmatpush1.bf16.msra.mxu0 %v1078
    %1450 = vmatprep.subr.bf16.mxu0 0
    %1451 = vmatpush1.bf16.msra.mxu0 %v1079
    %1452 = vmatprep.subr.bf16.mxu0 0
    %1453 = vmatpush1.bf16.msra.mxu0 %v1080
    %1454 = vmatprep.subr.bf16.mxu0 0
    %1455 = vmatpush1.bf16.msra.mxu0 %v1081
    %1456 = vmatprep.subr.bf16.mxu0 0
    %1457 = vmatpush1.bf16.msra.mxu0 %v1082
    %1458 = vmatprep.subr.bf16.mxu0 0
    %1459 = vmatpush1.bf16.msra.mxu0 %v1083
    %1460 = vmatprep.subr.bf16.mxu0 0
    %1461 = vmatpush1.bf16.msra.mxu0 %v1084
    %1462 = vmatprep.subr.bf16.mxu0 0
    %1463 = vmatpush1.bf16.msra.mxu0 %v1085
    %1464 = vmatprep.subr.bf16.mxu0 0
    %1465 = vmatpush1.bf16.msra.mxu0 0
    %1466 = vmatprep.subr.bf16.mxu0 0
    %1467 = vmatpush1.bf16.msra.mxu0 0
    %1468 = vmatprep.subr.bf16.mxu0 0
    %1469 = vmatpush1.bf16.msra.mxu0 0
    %1470 = vmatprep.subr.bf16.mxu0 0
    %1471 = vmatpush1.bf16.msra.mxu0 0
    %1472 = vmatprep.subr.bf16.mxu0 0
    %1473 = vmatpush1.bf16.msra.mxu0 0
    %1474 = vmatprep.subr.bf16.mxu0 0
    %1475 = vmatpush1.bf16.msra.mxu0 0
    %1476 = vmatprep.subr.bf16.mxu0 0
    %1477 = vmatpush1.bf16.msra.mxu0 0
    %1478 = vmatprep.subr.bf16.mxu0 0
    %1479 = vmatpush1.bf16.msra.mxu0 0
    %1480 = vmatprep.mubr.bf16.mxu0 0
    %1481 = vmatmul.mubr.bf16.gmra.mrb[0].mxu0 %v1447
    %v1482 = vpop.f32.mrb[0].mxu0
    %v1483 = vadd.f32 0.0, %v1482
    %v1484 = vpop.f32.mrb[0].mxu0
    %v1485 = vpop.f32.mrb[0].mxu0
    %v1486 = vpop.f32.mrb[0].mxu0
    %1487 = vdwg.mxu0
    %v1488 = vadd.f32 %v1040, %v1483
    %v1489 = vxor.u32 %v1488, 2147483648
    %v1490 = vmul.f32 %v1489, 1.442695
    %v1491 = vpow.pop %v1490
    %v1492 = vadd.f32 %v1491, 1.0
    %v1493 = vrcp.pop %v1492
    %v1494 = vmul.f32 1.0, %v1493
    %1495 = vrot.lane.b32.xlu0 %v1494, 64
    %v1496 = vpop.permute.xlu0 %1495
    %v1497 = vadd.f32 %v1483, %v885
    %v1498 = vmul.f32 %v1496, %v1497
    %v1499 = vadd.f32 %v1040, %v1498
    %v1500 = vtanh.pop %v1499
    %1501 = vrot.lane.b32.xlu0 %v1494, 96
    %v1502 = vpop.permute.xlu0 %1501
    %v1503 = vsub.f32 %v1446, %v1500
    %v1504 = vmul.f32 %v1502, %v1503
    %v1505 = vadd.f32 %v1500, %v1504
    %v1506 = vpack.c.bf16 %v1505, %v1505
    %1507 = vmatprep.subr.bf16.mxu0 0
    %1508 = vmatpush1.bf16.msra.mxu0 %v1078
    %1509 = vmatprep.subr.bf16.mxu0 0
    %1510 = vmatpush1.bf16.msra.mxu0 %v1079
    %1511 = vmatprep.subr.bf16.mxu0 0
    %1512 = vmatpush1.bf16.msra.mxu0 %v1080
    %1513 = vmatprep.subr.bf16.mxu0 0
    %1514 = vmatpush1.bf16.msra.mxu0 %v1081
    %1515 = vmatprep.subr.bf16.mxu0 0
    %1516 = vmatpush1.bf16.msra.mxu0 %v1082
    %1517 = vmatprep.subr.bf16.mxu0 0
    %1518 = vmatpush1.bf16.msra.mxu0 %v1083
    %1519 = vmatprep.subr.bf16.mxu0 0
    %1520 = vmatpush1.bf16.msra.mxu0 %v1084
    %1521 = vmatprep.subr.bf16.mxu0 0
    %1522 = vmatpush1.bf16.msra.mxu0 %v1085
    %1523 = vmatprep.subr.bf16.mxu0 0
    %1524 = vmatpush1.bf16.msra.mxu0 0
    %1525 = vmatprep.subr.bf16.mxu0 0
    %1526 = vmatpush1.bf16.msra.mxu0 0
    %1527 = vmatprep.subr.bf16.mxu0 0
    %1528 = vmatpush1.bf16.msra.mxu0 0
    %1529 = vmatprep.subr.bf16.mxu0 0
    %1530 = vmatpush1.bf16.msra.mxu0 0
    %1531 = vmatprep.subr.bf16.mxu0 0
    %1532 = vmatpush1.bf16.msra.mxu0 0
    %1533 = vmatprep.subr.bf16.mxu0 0
    %1534 = vmatpush1.bf16.msra.mxu0 0
    %1535 = vmatprep.subr.bf16.mxu0 0
    %1536 = vmatpush1.bf16.msra.mxu0 0
    %1537 = vmatprep.subr.bf16.mxu0 0
    %1538 = vmatpush1.bf16.msra.mxu0 0
    %1539 = vmatprep.mubr.bf16.mxu0 0
    %1540 = vmatmul.mubr.bf16.gmra.mrb[0].mxu0 %v1506
    %v1541 = vpop.f32.mrb[0].mxu0
    %v1542 = vadd.f32 0.0, %v1541
    %v1543 = vpop.f32.mrb[0].mxu0
    %v1544 = vpop.f32.mrb[0].mxu0
    %v1545 = vpop.f32.mrb[0].mxu0
    %1546 = vdwg.mxu0
    %v1547 = vadd.f32 %v1043, %v1542
    %v1548 = vxor.u32 %v1547, 2147483648
    %v1549 = vmul.f32 %v1548, 1.442695
    %v1550 = vpow.pop %v1549
    %v1551 = vadd.f32 %v1550, 1.0
    %v1552 = vrcp.pop %v1551
    %v1553 = vmul.f32 1.0, %v1552
    %1554 = vrot.lane.b32.xlu0 %v1553, 64
    %v1555 = vpop.permute.xlu0 %1554
    %v1556 = vadd.f32 %v1542, %v885
    %v1557 = vmul.f32 %v1555, %v1556
    %v1558 = vadd.f32 %v1043, %v1557
    %v1559 = vtanh.pop %v1558
    %1560 = vrot.lane.b32.xlu0 %v1553, 96
    %v1561 = vpop.permute.xlu0 %1560
    %v1562 = vsub.f32 %v1505, %v1559
    %v1563 = vmul.f32 %v1561, %v1562
    %v1564 = vadd.f32 %v1559, %v1563
    %v1565 = vpack.c.bf16 %v1564, %v1564
    %v1566 = vld [vmem:[#allocation12] sm:$0xf]
    %v1567 = vld [vmem:[#allocation12 + $0x4] sm:$0xf]
    %v1568 = vld [vmem:[#allocation12 + $0x8] sm:$0xf]
    %v1569 = vld [vmem:[#allocation12 + $0xc] sm:$0xf]
    %v1570 = vld [vmem:[#allocation12 + $0x10] sm:$0xf]
    %v1571 = vld [vmem:[#allocation12 + $0x14] sm:$0xf]
    %v1572 = vld [vmem:[#allocation12 + $0x18] sm:$0xf]
    %v1573 = vld [vmem:[#allocation12 + $0x1c] sm:$0xf]
    %v1574 = vld [vmem:[#allocation12 + $0x20] sm:$0xf]
    %v1575 = vld [vmem:[#allocation12 + $0x24] sm:$0xf]
    %v1576 = vld [vmem:[#allocation12 + $0x28] sm:$0xf]
    %v1577 = vld [vmem:[#allocation12 + $0x2c] sm:$0xf]
    %v1578 = vld [vmem:[#allocation12 + $0x30] sm:$0xf]
    %v1579 = vld [vmem:[#allocation12 + $0x34] sm:$0xf]
    %v1580 = vld [vmem:[#allocation12 + $0x38] sm:$0xf]
    %v1581 = vld [vmem:[#allocation12 + $0x3c] sm:$0xf]
    %v1582 = vld [vmem:[%s10] sm:$0x1]
    %v1584 = vlaneseq
    %v1585 = vshrl.u32 %v1584, 7
    %v1586 = vsub.s32 0, %v1585
    %v1587 = vrot.slane %v1582, %v1586
    %v1605 = vunpack.c.l.b16 %v1566
    %v1606 = vunpack.c.l.b16 %v1567
    %v1607 = vunpack.c.l.b16 %v1568
    %v1608 = vunpack.c.l.b16 %v1569
    %v1609 = vunpack.c.l.b16 %v1570
    %v1610 = vunpack.c.l.b16 %v1571
    %v1611 = vunpack.c.l.b16 %v1572
    %v1612 = vunpack.c.l.b16 %v1573
    %v1613 = vunpack.c.l.b16 %v1574
    %v1614 = vunpack.c.l.b16 %v1575
    %v1615 = vunpack.c.l.b16 %v1576
    %v1616 = vunpack.c.l.b16 %v1577
    %v1617 = vunpack.c.l.b16 %v1578
    %v1618 = vunpack.c.l.b16 %v1579
    %v1619 = vunpack.c.l.b16 %v1580
    %v1620 = vunpack.c.l.b16 %v1581
    %v1621 = vpack.c.b16 %v1606, %v1605
    %v1622 = vpack.c.b16 %v1608, %v1607
    %v1623 = vpack.c.b16 %v1610, %v1609
    %v1624 = vpack.c.b16 %v1612, %v1611
    %v1625 = vpack.c.b16 %v1614, %v1613
    %v1626 = vpack.c.b16 %v1616, %v1615
    %v1627 = vpack.c.b16 %v1618, %v1617
    %v1628 = vpack.c.b16 %v1620, %v1619
    %1637 = vmatprep.subr.bf16.mxu0 0
    %1638 = vmatpush1.bf16.msra.mxu0 %v1621
    %1639 = vmatprep.subr.bf16.mxu0 0
    %1640 = vmatpush1.bf16.msra.mxu0 %v1622
    %1641 = vmatprep.subr.bf16.mxu0 0
    %1642 = vmatpush1.bf16.msra.mxu0 %v1623
    %1643 = vmatprep.subr.bf16.mxu0 0
    %1644 = vmatpush1.bf16.msra.mxu0 %v1624
    %1645 = vmatprep.subr.bf16.mxu0 0
    %1646 = vmatpush1.bf16.msra.mxu0 %v1625
    %1647 = vmatprep.subr.bf16.mxu0 0
    %1648 = vmatpush1.bf16.msra.mxu0 %v1626
    %1649 = vmatprep.subr.bf16.mxu0 0
    %1650 = vmatpush1.bf16.msra.mxu0 %v1627
    %1651 = vmatprep.subr.bf16.mxu0 0
    %1652 = vmatpush1.bf16.msra.mxu0 %v1628
    %1653 = vmatprep.subr.bf16.mxu0 0
    %1654 = vmatpush1.bf16.msra.mxu0 0
    %1655 = vmatprep.subr.bf16.mxu0 0
    %1656 = vmatpush1.bf16.msra.mxu0 0
    %1657 = vmatprep.subr.bf16.mxu0 0
    %1658 = vmatpush1.bf16.msra.mxu0 0
    %1659 = vmatprep.subr.bf16.mxu0 0
    %1660 = vmatpush1.bf16.msra.mxu0 0
    %1661 = vmatprep.subr.bf16.mxu0 0
    %1662 = vmatpush1.bf16.msra.mxu0 0
    %1663 = vmatprep.subr.bf16.mxu0 0
    %1664 = vmatpush1.bf16.msra.mxu0 0
    %1665 = vmatprep.subr.bf16.mxu0 0
    %1666 = vmatpush1.bf16.msra.mxu0 0
    %1667 = vmatprep.subr.bf16.mxu0 0
    %1668 = vmatpush1.bf16.msra.mxu0 0
    %1669 = vmatprep.mubr.bf16.mxu0 0
    %1670 = vmatmul.mubr.bf16.gmra.mrb[0].mxu0 %v1565
    %v1671 = vpop.f32.mrb[0].mxu0
    %v1672 = vadd.f32 %v1587, %v1671
    %v1673 = vpop.f32.mrb[0].mxu0
    %v1674 = vpop.f32.mrb[0].mxu0
    %v1675 = vpop.f32.mrb[0].mxu0
    %1676 = vdwg.mxu0
    %1677 = vst [vmem:[#allocation14] sm:$0xff] %v1672
    // Predicated region
    $region70: #{tpu_custom_call.1} parent=1 // pred_check
      _
    $region71: #{tpu_custom_call.1} parent=1 // pred_check_branch
      %1679 = sbr.rel (0) target = $region73
    $region72: #{tpu_custom_call.1} parent=1 // pred_region
      %s1681 = ssub.s32 128, 128
      %1682 = vsyncadd [#allocation5], %s1681
      %s1684 = sshll.u32 [#allocation14], 4
      %s1685 = int_to_ptr.vmem [resolvable:$true] %s1684
      %1687 = dma.vmem_to_hbm [thread:$0]  %s1685, 128, %s11, [#allocation5]
    $region73: #{tpu_custom_call.1} parent=1 // pred_fallthru
      _
    // Predicated region
    $region74: #{tpu_custom_call.1} parent=1 // pred_check
      _
    $region75: #{tpu_custom_call.1} parent=1 // pred_check_branch
      %1689 = sbr.rel (0) target = $region77
    $region76: #{tpu_custom_call.1} parent=1 // pred_region
      %1690 = dma.done [#allocation5], 128
    $region77: #{tpu_custom_call.1} parent=1 // pred_fallthru
      _
    %1691 = vsyncpa [#allocation4], 1
    %1692 = vsyncpa [#allocation7], 1
    %1693 = vsyncpa [#allocation10], 1
    %1694 = vsyncpa [#allocation13], 1
    %1695 = vsyncpa [#allocation5], 1

</llo_original>
